<compile_context>
chip_gen: v6e
topology: v6e:2x2x1
jax: 0.10.0
libtpu: 0.0.40
codegen_flags: <defaults>
</compile_context>

<pallas_src>
import functools

import jax
import jax.numpy as jnp
from jax.experimental import pallas as pl
from jax.experimental.pallas import tpu as pltpu  # noqa: F401  (TPU backend)


def _mha_kernel(qkv_ref, bias_ref, w_ref, b_ref, out_ref, *,
                d_model, d_k, d_v, h, hidden):
    f32 = jnp.float32
    d3 = 3 * d_model
    h3 = 3 * hidden
    hdk = h * d_k
    hdv = h * d_v
    qkv_w = 2 * hdk + hdv

    xcat = qkv_ref[...].astype(f32)          # (N, 3*d_model): q|k|v lane-packed
    bias = bias_ref[...]                     # (N, N) additive block-diag mask

    # ---- static offsets into the packed weight slab (row offsets are x8) ----
    o_w1 = 0
    o_w2 = o_w1 + d3
    o_wp = o_w2 + h3
    o_wo = o_wp + d3
    w1 = w_ref[o_w1:o_w2, 0:h3]              # (3*d_model, 3*hidden) block-diag
    w2 = w_ref[o_w2:o_wp, 0:d3]              # (3*hidden, 3*d_model) block-diag
    wp = w_ref[o_wp:o_wo, 0:qkv_w]           # (3*d_model, 2*h*d_k+h*d_v) block-diag
    wo = w_ref[o_wo:o_wo + hdv, 0:d_model]   # (h*d_v, d_model)

    b1 = b_ref[0:1, 0:h3]
    b2 = b_ref[1:2, 0:d3]
    bp = b_ref[2:3, 0:qkv_w]
    bo = b_ref[3:4, 0:d_model]
    ln_g = b_ref[4:5, 0:d_model]
    ln_b = b_ref[5:6, 0:d_model]

    # ---- fused DynamicWeightGenerator gates: 2 matmuls cover q, k and v -----
    hid = jnp.maximum(jnp.dot(xcat, w1, preferred_element_type=f32) + b1, 0.0)
    gate = jax.nn.sigmoid(jnp.dot(hid, w2, preferred_element_type=f32) + b2)
    xg = xcat * gate                         # gated q|k|v, (N, 3*d_model)
    qg = xg[:, 0:d_model]                    # gated queries (residual branch)

    # ---- Q/K/V projections: ONE block-diagonal matmul (contraction = 96) ----
    proj = jnp.dot(xg, wp, preferred_element_type=f32) + bp   # (N, 2*h*d_k+h*d_v)

    # ---- per-head scaled dot-product attention -------------------------------
    # Score / PV matmuls are inherently per-head on the MXU (a batched einsum
    # lowers to the same h pushes); static lane slices keep everything 2-D and
    # avoid (h, n, d_k) relayouts.
    scale = 1.0 / float(d_k) ** 0.5
    dn_nt = (((1,), (1,)), ((), ()))         # contract last dims: A @ B^T
    o_heads = []
    for i in range(h):
        q_i = proj[:, i * d_k:(i + 1) * d_k]
        k_i = proj[:, hdk + i * d_k:hdk + (i + 1) * d_k]
        v_i = proj[:, 2 * hdk + i * d_v:2 * hdk + (i + 1) * d_v]
        att = jax.lax.dot_general(q_i, k_i, dn_nt, preferred_element_type=f32)
        att = att * scale + bias
        att = att - jnp.max(att, axis=-1, keepdims=True)
        p = jnp.exp(att)
        p = p * pl.reciprocal(jnp.sum(p, axis=-1, keepdims=True), approx=True)
        o_heads.append(jnp.dot(p, v_i, preferred_element_type=f32))
    o_flat = jnp.concatenate(o_heads, axis=-1)                 # (N, h*d_v)

    # ---- output projection: ONE lane-packed matmul ---------------------------
    o_proj = jnp.dot(o_flat, wo, preferred_element_type=f32) + bo   # (N, d_model)

    # ---- dropout (eval) = identity; residual uses the GATED queries ----------
    # (matches the PyTorch module: `queries` is reassigned to the gated value
    # before `self.layer_norm(queries + out)`).
    # TODO(synk): training-mode stochastic dropout (p=0.1) not implemented.
    y = qg + o_proj
    mean = jnp.mean(y, axis=-1, keepdims=True)
    var = jnp.mean(jnp.square(y - mean), axis=-1, keepdims=True)
    y_n = (y - mean) * jax.lax.rsqrt(var + 1e-5)
    out_ref[...] = (y_n * ln_g + ln_b).astype(out_ref.dtype)


def _block_diag(mats):
    rows = sum(int(m.shape[0]) for m in mats)
    cols = sum(int(m.shape[1]) for m in mats)
    out = jnp.zeros((rows, cols), jnp.float32)
    r = c = 0
    for m in mats:
        out = out.at[r:r + m.shape[0], c:c + m.shape[1]].set(m.astype(jnp.float32))
        r += int(m.shape[0])
        c += int(m.shape[1])
    return out


def _round_up(x, m):
    return (x + m - 1) // m * m


@functools.partial(jax.jit, static_argnames=("d_k", "d_v", "h"))
def multi_head_attention(queries, keys, values, params, *, d_k, d_v, h):
    b_s, nq, d_model = queries.shape
    nk = keys.shape[1]
    hidden = params["dwg_q_w1"].shape[0]
    f32 = jnp.float32

    d3 = 3 * d_model
    h3 = 3 * hidden
    hdk = h * d_k
    hdv = h * d_v
    qkv_w = 2 * hdk + hdv

    # ---- pack ALL parameters into TWO f32 slabs (2 DMA descriptors) ---------
    w1_bd = _block_diag([params[f"dwg_{n}_w1"].T for n in ("q", "k", "v")])
    w2_bd = _block_diag([params[f"dwg_{n}_w2"].T for n in ("q", "k", "v")])
    wp_bd = _block_diag([params["fcq_w"].T, params["fck_w"].T, params["fcv_w"].T])
    wo = params["fco_w"].T                                   # (h*d_v, d_model)

    slab_cols = _round_up(max(h3, d3, qkv_w, d_model), 128)
    slab_rows = _round_up(d3 + h3 + d3 + hdv, 8)
    w_slab = jnp.zeros((slab_rows, slab_cols), f32)
    row = 0
    for mat in (w1_bd, w2_bd, wp_bd, wo):
        w_slab = w_slab.at[row:row + mat.shape[0], 0:mat.shape[1]].set(mat)
        row += int(mat.shape[0])

    b_rows = [
        jnp.concatenate([params[f"dwg_{n}_b1"] for n in ("q", "k", "v")]),
        jnp.concatenate([params[f"dwg_{n}_b2"] for n in ("q", "k", "v")]),
        jnp.concatenate([params["fcq_b"], params["fck_b"], params["fcv_b"]]),
        params["fco_b"],
        params["ln_g"],
        params["ln_b"],
    ]
    b_slab = jnp.zeros((8, slab_cols), f32)
    for i, vec in enumerate(b_rows):
        b_slab = b_slab.at[i:i + 1, 0:vec.shape[0]].set(
            vec.reshape(1, -1).astype(f32))

    # ---- fuse (batch, seq) into rows; lane-concat q|k|v ---------------------
    n_max = max(nq, nk)
    N = b_s * n_max

    def pad_seq(x, n_from):
        return jnp.pad(x, ((0, 0), (0, n_max - n_from), (0, 0)))

    qkv_cat = jnp.concatenate(
        [pad_seq(queries, nq), pad_seq(keys, nk), pad_seq(values, nk)],
        axis=-1).reshape(N, d3).astype(f32)

    # additive bias: 0 for same-batch (query, key) pairs with a valid key
    # position, -1e30 otherwise (blocks cross-batch attention and key padding).
    batch_id = jnp.repeat(jnp.arange(b_s), n_max)
    key_pos = jnp.tile(jnp.arange(n_max), b_s)
    valid = (batch_id[:, None] == batch_id[None, :]) & (key_pos[None, :] < nk)
    attn_bias = jnp.where(valid, 0.0, -1e30).astype(f32)

    kernel = functools.partial(_mha_kernel, d_model=d_model, d_k=d_k, d_v=d_v,
                               h=h, hidden=hidden)

    # Single fused invocation: whole working set (<1 MiB) lives in VMEM.
    # TODO(synk): attention_mask / attention_weights are None in this test;
    # non-None masks/weights would be folded into the attn_bias path.
    out2 = pl.pallas_call(
        kernel,
        out_shape=jax.ShapeDtypeStruct((N, d_model), queries.dtype),
    )(qkv_cat, attn_bias, w_slab, b_slab)

    return out2.reshape(b_s, n_max, d_model)[:, :nq]


def init_params(key, d_model, d_k, d_v, h):
    """Deterministic synthetic init; PyTorch layouts: Linear weight (out, in), bias (out,)."""
    hidden = d_model // 2
    keys = jax.random.split(key, 16)

    def xavier(k, out_dim, in_dim):
        bound = (6.0 / (in_dim + out_dim)) ** 0.5
        return jax.random.uniform(k, (out_dim, in_dim), jnp.float32, -bound, bound)

    def lin_bias(k, out_dim, in_dim):
        bound = 1.0 / (in_dim ** 0.5)
        return jax.random.uniform(k, (out_dim,), jnp.float32, -bound, bound)

    p = {}
    # DynamicWeightGenerator q/k/v: fc1 (hidden, d_model), fc2 (d_model, hidden)
    for i, name in enumerate(("q", "k", "v")):
        p[f"dwg_{name}_w1"] = xavier(keys[4 * i + 0], hidden, d_model)
        p[f"dwg_{name}_b1"] = lin_bias(keys[4 * i + 1], hidden, d_model)
        p[f"dwg_{name}_w2"] = xavier(keys[4 * i + 2], d_model, hidden)
        p[f"dwg_{name}_b2"] = lin_bias(keys[4 * i + 3], d_model, hidden)
    # ScaledDotProductAttention projections (xavier weights, zero biases)
    p["fcq_w"] = xavier(keys[12], h * d_k, d_model)
    p["fcq_b"] = jnp.zeros((h * d_k,), jnp.float32)
    p["fck_w"] = xavier(keys[13], h * d_k, d_model)
    p["fck_b"] = jnp.zeros((h * d_k,), jnp.float32)
    p["fcv_w"] = xavier(keys[14], h * d_v, d_model)
    p["fcv_b"] = jnp.zeros((h * d_v,), jnp.float32)
    p["fco_w"] = xavier(keys[15], d_model, h * d_v)
    p["fco_b"] = jnp.zeros((d_model,), jnp.float32)
    # LayerNorm
    p["ln_g"] = jnp.ones((d_model,), jnp.float32)
    p["ln_b"] = jnp.zeros((d_model,), jnp.float32)
    return p


if __name__ == "__main__":
    d_model, d_k, d_v, h = 32, 8, 8, 4
    b_s, nq, nk = 2, 8, 8

    root = jax.random.PRNGKey(0)
    kq, kk_, kv, kp = jax.random.split(root, 4)
    queries = jax.random.normal(kq, (b_s, nq, d_model), jnp.float32)
    keys = jax.random.normal(kk_, (b_s, nk, d_model), jnp.float32)
    values = jax.random.normal(kv, (b_s, nk, d_model), jnp.float32)

    params = init_params(kp, d_model, d_k, d_v, h)

    out = multi_head_attention(queries, keys, values, params,
                               d_k=d_k, d_v=d_v, h=h)
    jax.block_until_ready(out)
    assert out.shape == (b_s, nq, d_model)
    print("KERNEL_OK")
</pallas_src>

<mosaic_0001>
module attributes {stable_mosaic.version = 11 : i64} {
  func.func @_mha_kernel(%arg0: memref<16x96xf32, #tpu.memory_space<vmem>>, %arg1: memref<16x16xf32, #tpu.memory_space<vmem>>, %arg2: memref<272x128xf32, #tpu.memory_space<vmem>>, %arg3: memref<8x128xf32, #tpu.memory_space<vmem>>, %arg4: memref<16x32xf32, #tpu.memory_space<vmem>>) attributes {dimension_semantics = [], scalar_prefetch = 0 : i64, scratch_operands = 0 : i64, tpu.core_type = #tpu.core_type<tc>} {
    %c0 = arith.constant 0 : index
    %c0_0 = arith.constant 0 : index
    %0 = vector.load %arg0[%c0, %c0_0] : memref<16x96xf32, #tpu.memory_space<vmem>>, vector<16x96xf32>
    %c0_1 = arith.constant 0 : index
    %c0_2 = arith.constant 0 : index
    %1 = vector.load %arg1[%c0_1, %c0_2] : memref<16x16xf32, #tpu.memory_space<vmem>>, vector<16x16xf32>
    %c0_3 = arith.constant 0 : index
    %c0_4 = arith.constant 0 : index
    %2 = vector.load %arg2[%c0_3, %c0_4] : memref<272x128xf32, #tpu.memory_space<vmem>>, vector<96x48xf32>
    %c96 = arith.constant 96 : index
    %c0_5 = arith.constant 0 : index
    %3 = vector.load %arg2[%c96, %c0_5] : memref<272x128xf32, #tpu.memory_space<vmem>>, vector<48x96xf32>
    %c144 = arith.constant 144 : index
    %c0_6 = arith.constant 0 : index
    %4 = vector.load %arg2[%c144, %c0_6] : memref<272x128xf32, #tpu.memory_space<vmem>>, vector<96x96xf32>
    %c240 = arith.constant 240 : index
    %c0_7 = arith.constant 0 : index
    %5 = vector.load %arg2[%c240, %c0_7] : memref<272x128xf32, #tpu.memory_space<vmem>>, vector<32x32xf32>
    %c0_8 = arith.constant 0 : index
    %c0_9 = arith.constant 0 : index
    %6 = vector.load %arg3[%c0_8, %c0_9] : memref<8x128xf32, #tpu.memory_space<vmem>>, vector<1x48xf32>
    %c1 = arith.constant 1 : index
    %c0_10 = arith.constant 0 : index
    %7 = vector.load %arg3[%c1, %c0_10] : memref<8x128xf32, #tpu.memory_space<vmem>>, vector<1x96xf32>
    %c2 = arith.constant 2 : index
    %c0_11 = arith.constant 0 : index
    %8 = vector.load %arg3[%c2, %c0_11] : memref<8x128xf32, #tpu.memory_space<vmem>>, vector<1x96xf32>
    %c3 = arith.constant 3 : index
    %c0_12 = arith.constant 0 : index
    %9 = vector.load %arg3[%c3, %c0_12] : memref<8x128xf32, #tpu.memory_space<vmem>>, vector<1x32xf32>
    %c4 = arith.constant 4 : index
    %c0_13 = arith.constant 0 : index
    %10 = vector.load %arg3[%c4, %c0_13] : memref<8x128xf32, #tpu.memory_space<vmem>>, vector<1x32xf32>
    %c5 = arith.constant 5 : index
    %c0_14 = arith.constant 0 : index
    %11 = vector.load %arg3[%c5, %c0_14] : memref<8x128xf32, #tpu.memory_space<vmem>>, vector<1x32xf32>
    %cst = arith.constant dense<0.000000e+00> : vector<16x48xf32>
    %12 = tpu.matmul %0, %2, %cst {dimension_numbers = #tpu.dot_dimension_numbers<[1], [0], [0], [1], [0, 0, 1, 1], [], []>} : vector<16x96xf32>, vector<96x48xf32>, vector<16x48xf32> -> vector<16x48xf32>
    %13 = vector.broadcast %6 : vector<1x48xf32> to vector<16x48xf32>
    %14 = arith.addf %12, %13 : vector<16x48xf32>
    %cst_15 = arith.constant 0.000000e+00 : f32
    %15 = vector.broadcast %cst_15 : f32 to vector<16x48xf32>
    %16 = arith.maximumf %14, %15 : vector<16x48xf32>
    %cst_16 = arith.constant dense<0.000000e+00> : vector<16x96xf32>
    %17 = tpu.matmul %16, %3, %cst_16 {dimension_numbers = #tpu.dot_dimension_numbers<[1], [0], [0], [1], [0, 0, 1, 1], [], []>} : vector<16x48xf32>, vector<48x96xf32>, vector<16x96xf32> -> vector<16x96xf32>
    %18 = vector.broadcast %7 : vector<1x96xf32> to vector<16x96xf32>
    %19 = arith.addf %17, %18 : vector<16x96xf32>
    %20 = arith.negf %19 : vector<16x96xf32>
    %21 = math.exp %20 : vector<16x96xf32>
    %cst_17 = arith.constant 1.000000e+00 : f32
    %22 = vector.broadcast %cst_17 : f32 to vector<16x96xf32>
    %23 = arith.addf %22, %21 : vector<16x96xf32>
    %24 = arith.divf %22, %23 : vector<16x96xf32>
    %25 = arith.mulf %0, %24 : vector<16x96xf32>
    %26 = vector.extract_strided_slice %25 {offsets = [0, 0], sizes = [16, 32], strides = [1, 1]} : vector<16x96xf32> to vector<16x32xf32>
    %cst_18 = arith.constant dense<0.000000e+00> : vector<16x96xf32>
    %27 = tpu.matmul %25, %4, %cst_18 {dimension_numbers = #tpu.dot_dimension_numbers<[1], [0], [0], [1], [0, 0, 1, 1], [], []>} : vector<16x96xf32>, vector<96x96xf32>, vector<16x96xf32> -> vector<16x96xf32>
    %28 = vector.broadcast %8 : vector<1x96xf32> to vector<16x96xf32>
    %29 = arith.addf %27, %28 : vector<16x96xf32>
    %30 = vector.extract_strided_slice %29 {offsets = [0, 0], sizes = [16, 8], strides = [1, 1]} : vector<16x96xf32> to vector<16x8xf32>
    %31 = vector.extract_strided_slice %29 {offsets = [0, 32], sizes = [16, 8], strides = [1, 1]} : vector<16x96xf32> to vector<16x8xf32>
    %32 = vector.extract_strided_slice %29 {offsets = [0, 64], sizes = [16, 8], strides = [1, 1]} : vector<16x96xf32> to vector<16x8xf32>
    %cst_19 = arith.constant dense<0.000000e+00> : vector<16x16xf32>
    %33 = tpu.matmul %30, %31, %cst_19 {dimension_numbers = #tpu.dot_dimension_numbers<[1], [1], [0], [0], [0, 0, 1, 0], [], []>} : vector<16x8xf32>, vector<16x8xf32>, vector<16x16xf32> -> vector<16x16xf32>
    %cst_20 = arith.constant 0.353553385 : f32
    %34 = vector.broadcast %cst_20 : f32 to vector<16x16xf32>
    %35 = arith.mulf %33, %34 : vector<16x16xf32>
    %36 = arith.addf %35, %1 : vector<16x16xf32>
    %cst_21 = arith.constant dense<0xFF800000> : vector<16xf32>
    %37 = vector.multi_reduction <maximumf>, %36, %cst_21 [1] : vector<16x16xf32> to vector<16xf32>
    %38 = vector.shape_cast %37 : vector<16xf32> to vector<16x1xf32>
    %39 = vector.broadcast %38 : vector<16x1xf32> to vector<16x16xf32>
    %40 = arith.subf %36, %39 : vector<16x16xf32>
    %41 = math.exp %40 : vector<16x16xf32>
    %cst_22 = arith.constant dense<0.000000e+00> : vector<16xf32>
    %42 = vector.multi_reduction <add>, %41, %cst_22 [1] : vector<16x16xf32> to vector<16xf32>
    %43 = vector.shape_cast %42 : vector<16xf32> to vector<16x1xf32>
    %44 = tpu.reciprocal %43 {approx = true} : vector<16x1xf32> -> vector<16x1xf32>
    %45 = vector.broadcast %44 : vector<16x1xf32> to vector<16x16xf32>
    %46 = arith.mulf %41, %45 : vector<16x16xf32>
    %cst_23 = arith.constant dense<0.000000e+00> : vector<16x8xf32>
    %47 = tpu.matmul %46, %32, %cst_23 {dimension_numbers = #tpu.dot_dimension_numbers<[1], [0], [0], [1], [0, 0, 1, 1], [], []>} : vector<16x16xf32>, vector<16x8xf32>, vector<16x8xf32> -> vector<16x8xf32>
    %48 = vector.extract_strided_slice %29 {offsets = [0, 8], sizes = [16, 8], strides = [1, 1]} : vector<16x96xf32> to vector<16x8xf32>
    %49 = vector.extract_strided_slice %29 {offsets = [0, 40], sizes = [16, 8], strides = [1, 1]} : vector<16x96xf32> to vector<16x8xf32>
    %50 = vector.extract_strided_slice %29 {offsets = [0, 72], sizes = [16, 8], strides = [1, 1]} : vector<16x96xf32> to vector<16x8xf32>
    %cst_24 = arith.constant dense<0.000000e+00> : vector<16x16xf32>
    %51 = tpu.matmul %48, %49, %cst_24 {dimension_numbers = #tpu.dot_dimension_numbers<[1], [1], [0], [0], [0, 0, 1, 0], [], []>} : vector<16x8xf32>, vector<16x8xf32>, vector<16x16xf32> -> vector<16x16xf32>
    %cst_25 = arith.constant 0.353553385 : f32
    %52 = vector.broadcast %cst_25 : f32 to vector<16x16xf32>
    %53 = arith.mulf %51, %52 : vector<16x16xf32>
    %54 = arith.addf %53, %1 : vector<16x16xf32>
    %cst_26 = arith.constant dense<0xFF800000> : vector<16xf32>
    %55 = vector.multi_reduction <maximumf>, %54, %cst_26 [1] : vector<16x16xf32> to vector<16xf32>
    %56 = vector.shape_cast %55 : vector<16xf32> to vector<16x1xf32>
    %57 = vector.broadcast %56 : vector<16x1xf32> to vector<16x16xf32>
    %58 = arith.subf %54, %57 : vector<16x16xf32>
    %59 = math.exp %58 : vector<16x16xf32>
    %cst_27 = arith.constant dense<0.000000e+00> : vector<16xf32>
    %60 = vector.multi_reduction <add>, %59, %cst_27 [1] : vector<16x16xf32> to vector<16xf32>
    %61 = vector.shape_cast %60 : vector<16xf32> to vector<16x1xf32>
    %62 = tpu.reciprocal %61 {approx = true} : vector<16x1xf32> -> vector<16x1xf32>
    %63 = vector.broadcast %62 : vector<16x1xf32> to vector<16x16xf32>
    %64 = arith.mulf %59, %63 : vector<16x16xf32>
    %cst_28 = arith.constant dense<0.000000e+00> : vector<16x8xf32>
    %65 = tpu.matmul %64, %50, %cst_28 {dimension_numbers = #tpu.dot_dimension_numbers<[1], [0], [0], [1], [0, 0, 1, 1], [], []>} : vector<16x16xf32>, vector<16x8xf32>, vector<16x8xf32> -> vector<16x8xf32>
    %66 = vector.extract_strided_slice %29 {offsets = [0, 16], sizes = [16, 8], strides = [1, 1]} : vector<16x96xf32> to vector<16x8xf32>
    %67 = vector.extract_strided_slice %29 {offsets = [0, 48], sizes = [16, 8], strides = [1, 1]} : vector<16x96xf32> to vector<16x8xf32>
    %68 = vector.extract_strided_slice %29 {offsets = [0, 80], sizes = [16, 8], strides = [1, 1]} : vector<16x96xf32> to vector<16x8xf32>
    %cst_29 = arith.constant dense<0.000000e+00> : vector<16x16xf32>
    %69 = tpu.matmul %66, %67, %cst_29 {dimension_numbers = #tpu.dot_dimension_numbers<[1], [1], [0], [0], [0, 0, 1, 0], [], []>} : vector<16x8xf32>, vector<16x8xf32>, vector<16x16xf32> -> vector<16x16xf32>
    %cst_30 = arith.constant 0.353553385 : f32
    %70 = vector.broadcast %cst_30 : f32 to vector<16x16xf32>
    %71 = arith.mulf %69, %70 : vector<16x16xf32>
    %72 = arith.addf %71, %1 : vector<16x16xf32>
    %cst_31 = arith.constant dense<0xFF800000> : vector<16xf32>
    %73 = vector.multi_reduction <maximumf>, %72, %cst_31 [1] : vector<16x16xf32> to vector<16xf32>
    %74 = vector.shape_cast %73 : vector<16xf32> to vector<16x1xf32>
    %75 = vector.broadcast %74 : vector<16x1xf32> to vector<16x16xf32>
    %76 = arith.subf %72, %75 : vector<16x16xf32>
    %77 = math.exp %76 : vector<16x16xf32>
    %cst_32 = arith.constant dense<0.000000e+00> : vector<16xf32>
    %78 = vector.multi_reduction <add>, %77, %cst_32 [1] : vector<16x16xf32> to vector<16xf32>
    %79 = vector.shape_cast %78 : vector<16xf32> to vector<16x1xf32>
    %80 = tpu.reciprocal %79 {approx = true} : vector<16x1xf32> -> vector<16x1xf32>
    %81 = vector.broadcast %80 : vector<16x1xf32> to vector<16x16xf32>
    %82 = arith.mulf %77, %81 : vector<16x16xf32>
    %cst_33 = arith.constant dense<0.000000e+00> : vector<16x8xf32>
    %83 = tpu.matmul %82, %68, %cst_33 {dimension_numbers = #tpu.dot_dimension_numbers<[1], [0], [0], [1], [0, 0, 1, 1], [], []>} : vector<16x16xf32>, vector<16x8xf32>, vector<16x8xf32> -> vector<16x8xf32>
    %84 = vector.extract_strided_slice %29 {offsets = [0, 24], sizes = [16, 8], strides = [1, 1]} : vector<16x96xf32> to vector<16x8xf32>
    %85 = vector.extract_strided_slice %29 {offsets = [0, 56], sizes = [16, 8], strides = [1, 1]} : vector<16x96xf32> to vector<16x8xf32>
    %86 = vector.extract_strided_slice %29 {offsets = [0, 88], sizes = [16, 8], strides = [1, 1]} : vector<16x96xf32> to vector<16x8xf32>
    %cst_34 = arith.constant dense<0.000000e+00> : vector<16x16xf32>
    %87 = tpu.matmul %84, %85, %cst_34 {dimension_numbers = #tpu.dot_dimension_numbers<[1], [1], [0], [0], [0, 0, 1, 0], [], []>} : vector<16x8xf32>, vector<16x8xf32>, vector<16x16xf32> -> vector<16x16xf32>
    %cst_35 = arith.constant 0.353553385 : f32
    %88 = vector.broadcast %cst_35 : f32 to vector<16x16xf32>
    %89 = arith.mulf %87, %88 : vector<16x16xf32>
    %90 = arith.addf %89, %1 : vector<16x16xf32>
    %cst_36 = arith.constant dense<0xFF800000> : vector<16xf32>
    %91 = vector.multi_reduction <maximumf>, %90, %cst_36 [1] : vector<16x16xf32> to vector<16xf32>
    %92 = vector.shape_cast %91 : vector<16xf32> to vector<16x1xf32>
    %93 = vector.broadcast %92 : vector<16x1xf32> to vector<16x16xf32>
    %94 = arith.subf %90, %93 : vector<16x16xf32>
    %95 = math.exp %94 : vector<16x16xf32>
    %cst_37 = arith.constant dense<0.000000e+00> : vector<16xf32>
    %96 = vector.multi_reduction <add>, %95, %cst_37 [1] : vector<16x16xf32> to vector<16xf32>
    %97 = vector.shape_cast %96 : vector<16xf32> to vector<16x1xf32>
    %98 = tpu.reciprocal %97 {approx = true} : vector<16x1xf32> -> vector<16x1xf32>
    %99 = vector.broadcast %98 : vector<16x1xf32> to vector<16x16xf32>
    %100 = arith.mulf %95, %99 : vector<16x16xf32>
    %cst_38 = arith.constant dense<0.000000e+00> : vector<16x8xf32>
    %101 = tpu.matmul %100, %86, %cst_38 {dimension_numbers = #tpu.dot_dimension_numbers<[1], [0], [0], [1], [0, 0, 1, 1], [], []>} : vector<16x16xf32>, vector<16x8xf32>, vector<16x8xf32> -> vector<16x8xf32>
    %102 = tpu.concatenate %47, %65, %83, %101 in 1 : vector<16x8xf32>, vector<16x8xf32>, vector<16x8xf32>, vector<16x8xf32> -> vector<16x32xf32>
    %cst_39 = arith.constant dense<0.000000e+00> : vector<16x32xf32>
    %103 = tpu.matmul %102, %5, %cst_39 {dimension_numbers = #tpu.dot_dimension_numbers<[1], [0], [0], [1], [0, 0, 1, 1], [], []>} : vector<16x32xf32>, vector<32x32xf32>, vector<16x32xf32> -> vector<16x32xf32>
    %104 = vector.broadcast %9 : vector<1x32xf32> to vector<16x32xf32>
    %105 = arith.addf %103, %104 : vector<16x32xf32>
    %106 = arith.addf %26, %105 : vector<16x32xf32>
    %cst_40 = arith.constant dense<0.000000e+00> : vector<16xf32>
    %107 = vector.multi_reduction <add>, %106, %cst_40 [1] : vector<16x32xf32> to vector<16xf32>
    %108 = vector.shape_cast %107 : vector<16xf32> to vector<16x1xf32>
    %cst_41 = arith.constant 3.200000e+01 : f32
    %109 = vector.broadcast %cst_41 : f32 to vector<16x1xf32>
    %110 = arith.divf %108, %109 : vector<16x1xf32>
    %111 = vector.broadcast %110 : vector<16x1xf32> to vector<16x32xf32>
    %112 = arith.subf %106, %111 : vector<16x32xf32>
    %113 = arith.mulf %112, %112 : vector<16x32xf32>
    %cst_42 = arith.constant dense<0.000000e+00> : vector<16xf32>
    %114 = vector.multi_reduction <add>, %113, %cst_42 [1] : vector<16x32xf32> to vector<16xf32>
    %115 = vector.shape_cast %114 : vector<16xf32> to vector<16x1xf32>
    %cst_43 = arith.constant 3.200000e+01 : f32
    %116 = vector.broadcast %cst_43 : f32 to vector<16x1xf32>
    %117 = arith.divf %115, %116 : vector<16x1xf32>
    %118 = vector.broadcast %110 : vector<16x1xf32> to vector<16x32xf32>
    %119 = arith.subf %106, %118 : vector<16x32xf32>
    %cst_44 = arith.constant 9.99999974E-6 : f32
    %120 = vector.broadcast %cst_44 : f32 to vector<16x1xf32>
    %121 = arith.addf %117, %120 : vector<16x1xf32>
    %122 = math.rsqrt %121 : vector<16x1xf32>
    %123 = vector.broadcast %122 : vector<16x1xf32> to vector<16x32xf32>
    %124 = arith.mulf %119, %123 : vector<16x32xf32>
    %125 = vector.broadcast %10 : vector<1x32xf32> to vector<16x32xf32>
    %126 = arith.mulf %124, %125 : vector<16x32xf32>
    %127 = vector.broadcast %11 : vector<1x32xf32> to vector<16x32xf32>
    %128 = arith.addf %126, %127 : vector<16x32xf32>
    %c0_45 = arith.constant 0 : index
    %c0_46 = arith.constant 0 : index
    %129 = vector.load %arg4[%c0_45, %c0_46] : memref<16x32xf32, #tpu.memory_space<vmem>>, vector<16x32xf32>
    tpu.vector_store %arg4[%c0_45, %c0_46], %128 {strides = array<i32>} : memref<16x32xf32, #tpu.memory_space<vmem>>, vector<16x32xf32>,
    return
  }
}

</mosaic_0001>

<llo_original>
// kernel: eq.8
$region0: #{eq.8}
  %s0 = inlined_call_operand.vmem [shape: s32[2,8], index: 0, kind: input, shape index: {}]
  %s1 = inlined_call_operand.vmem [shape: s32[16], index: 1, kind: output, shape index: {}]
  $region1: #{eq.8} parent=0
    #allocation0 [shape = 'u8[4096]{0}', space=vmem, size = 0x1000, scoped, tag = 'scoped mem for output reshape']
    #allocation1 [shape = 'u8[4096]{0}', space=vmem, size = 0x1000, scoped, tag = 'scoped mem for input reshape']
    %s3 = sshll.u32 1, 2
    %s4 = ssub.s32 %s3, 1
    %v5 = vld [vmem:[%s0] sm:%s4]
    %6 = vst [vmem:[#allocation1] sm:%s4] %v5
    %v7 = vld [vmem:[#allocation1] sm:$0x1]
    %vm8 = vcmask 64512
    %9 = vst.msk [vmem:[#allocation0] sm:$0x1] %vm8, %v7
    %s10 = scalar_lea.vmem [#allocation1], 1
    %v11 = vld [vmem:[%s10] sm:$0x1]
    %12 = vrot.lane.b32.xlu0 %v11, 8
    %v13 = vpop.permute.xlu0 %12
    %vm14 = vcmask 130112
    %15 = vst.msk [vmem:[#allocation0] sm:$0x1] %vm14, %v13
    %s17 = sshll.u32 1, 1
    %s18 = ssub.s32 %s17, 1
    %v20 = vld [vmem:[#allocation0] sm:%s18]
    %s21 = sshll.u32 1, 1
    %s22 = ssub.s32 %s21, 1
    %23 = vst [vmem:[%s1] sm:%s22] %v20

// kernel: multi_head_attention.1
$region0: #{multi_head_attention.1}
  #allocation0 [shape = 'u32[]', space=smem, size = 0x4, offset = 0x4, fixed_abs, tag = 'smem constant byte address 0x4 - core index']
  #allocation1 [shape = 'u32[144,128]{1,0:T(1,128)}', space=vmem, size = 0x12000, scoped, tag = 'internal scratch']
  %s0 = inlined_call_operand.vmem [shape: f32[16,96], index: 0, kind: input, shape index: {}]
  %s1 = inlined_call_operand.vmem [shape: f32[16,16], index: 1, kind: input, shape index: {}]
  %s2 = inlined_call_operand.vmem [shape: f32[272,128], index: 2, kind: input, shape index: {}]
  %s3 = inlined_call_operand.vmem [shape: f32[8,128], index: 3, kind: input, shape index: {}]
  %s4 = inlined_call_operand.hbm [shape: f32[16,32], index: 4, kind: output, shape index: {}]
  %s5 = sld [smem:[#allocation0]]
  $region26: #{multi_head_attention.1} parent=0
    _
  %s7 = ssub.s32 1, %s5
  %s8 = scalar_select 0, %s7, %s5
  $region1: #{multi_head_attention.1} parent=0
    #allocation2 [shape = 'u8[8192]{0}', space=vmem, size = 0x2000, scoped, tag = 'output window, operand 0, single buffered']
    #allocation3 [shape = 's32[1]{0}', space=sflag, size = 0x4, scoped, tag = 'scoped memory for multi_head_attention.1']
    %9 = vsyncpa [#allocation3], 0
    // Predicated region
    $region2: #{multi_head_attention.1} parent=1 // pred_check
      _
    $region3: #{multi_head_attention.1} parent=1 // pred_check_branch
      %11 = sbr.rel (0) target = $region5
    $region4: #{multi_head_attention.1} parent=1 // pred_region
      _
    $region5: #{multi_head_attention.1} parent=1 // pred_fallthru
      _
    // Predicated region
    $region6: #{multi_head_attention.1} parent=1 // pred_check
      _
    $region7: #{multi_head_attention.1} parent=1 // pred_check_branch
      %13 = sbr.rel (0) target = $region9
    $region8: #{multi_head_attention.1} parent=1 // pred_region
      _
    $region9: #{multi_head_attention.1} parent=1 // pred_fallthru
      _
    // Predicated region
    $region10: #{multi_head_attention.1} parent=1 // pred_check
      _
    $region11: #{multi_head_attention.1} parent=1 // pred_check_branch
      %15 = sbr.rel (0) target = $region13
    $region12: #{multi_head_attention.1} parent=1 // pred_region
      _
    $region13: #{multi_head_attention.1} parent=1 // pred_fallthru
      _
    // Predicated region
    $region14: #{multi_head_attention.1} parent=1 // pred_check
      _
    $region15: #{multi_head_attention.1} parent=1 // pred_check_branch
      %17 = sbr.rel (0) target = $region17
    $region16: #{multi_head_attention.1} parent=1 // pred_region
      _
    $region17: #{multi_head_attention.1} parent=1 // pred_fallthru
      _
    %v18 = vld [vmem:[%s0] sm:$0xff]
    %v19 = vld [vmem:[%s0 + $0x8] sm:$0xff]
    %v20 = vld [vmem:[%s1] sm:$0xff]
    %v21 = vld [vmem:[%s1 + $0x8] sm:$0xff]
    %v22 = vld [vmem:[%s2] sm:$0xff]
    %v23 = vld [vmem:[%s2 + $0x8] sm:$0xff]
    %v24 = vld [vmem:[%s2 + $0x10] sm:$0xff]
    %v25 = vld [vmem:[%s2 + $0x18] sm:$0xff]
    %v26 = vld [vmem:[%s2 + $0x20] sm:$0xff]
    %v27 = vld [vmem:[%s2 + $0x28] sm:$0xff]
    %v28 = vld [vmem:[%s2 + $0x30] sm:$0xff]
    %v29 = vld [vmem:[%s2 + $0x38] sm:$0xff]
    %v30 = vld [vmem:[%s2 + $0x40] sm:$0xff]
    %v31 = vld [vmem:[%s2 + $0x48] sm:$0xff]
    %v32 = vld [vmem:[%s2 + $0x50] sm:$0xff]
    %v33 = vld [vmem:[%s2 + $0x58] sm:$0xff]
    %v34 = vld [vmem:[%s2 + $0x60] sm:$0xff]
    %v35 = vld [vmem:[%s2 + $0x68] sm:$0xff]
    %v36 = vld [vmem:[%s2 + $0x70] sm:$0xff]
    %v37 = vld [vmem:[%s2 + $0x78] sm:$0xff]
    %v38 = vld [vmem:[%s2 + $0x80] sm:$0xff]
    %v39 = vld [vmem:[%s2 + $0x88] sm:$0xff]
    %v40 = vld [vmem:[%s2 + $0x90] sm:$0xff]
    %v41 = vld [vmem:[%s2 + $0x98] sm:$0xff]
    %v42 = vld [vmem:[%s2 + $0xa0] sm:$0xff]
    %v43 = vld [vmem:[%s2 + $0xa8] sm:$0xff]
    %v44 = vld [vmem:[%s2 + $0xb0] sm:$0xff]
    %v45 = vld [vmem:[%s2 + $0xb8] sm:$0xff]
    %v46 = vld [vmem:[%s2 + $0xc0] sm:$0xff]
    %v47 = vld [vmem:[%s2 + $0xc8] sm:$0xff]
    %v48 = vld [vmem:[%s2 + $0xd0] sm:$0xff]
    %v49 = vld [vmem:[%s2 + $0xd8] sm:$0xff]
    %v50 = vld [vmem:[%s2 + $0xe0] sm:$0xff]
    %v51 = vld [vmem:[%s2 + $0xe8] sm:$0xff]
    %v52 = vld [vmem:[%s2 + $0xf0] sm:$0xff]
    %v53 = vld [vmem:[%s2 + $0xf8] sm:$0xff]
    %v54 = vld [vmem:[%s2 + $0x100] sm:$0xff]
    %v55 = vld [vmem:[%s2 + $0x108] sm:$0xff]
    %v56 = vld [vmem:[%s3] sm:$0x1]
    %v57 = vld [vmem:[%s3 + $0x1] sm:$0x1]
    %v58 = vld [vmem:[%s3 + $0x2] sm:$0x1]
    %v59 = vld [vmem:[%s3 + $0x3] sm:$0x1]
    %v60 = vld [vmem:[%s3 + $0x4] sm:$0x1]
    %v61 = vld [vmem:[%s3 + $0x5] sm:$0x1]
    %v62 = vlaneseq
    %v63 = vshrl.u32 %v62, 7
    %v64 = vsub.s32 0, %v63
    %v65 = vrot.slane %v56, %v64
    %vm66 = vcmask 785408
    %v68 = vsel %vm66, %v18, 0
    %v71 = vsel %vm66, %v19, 0
    %73 = vmatprep.subr.mxu0 0.0
    %74 = vmatpush1.msra.mxu0 0.0
    %75 = vmatprep.subr.mxu0 0.0
    %76 = vmatpush1.msra.mxu0 0.0
    %77 = vmatprep.subr.mxu0 0.0
    %78 = vmatpush1.msra.mxu0 0.0
    %79 = vmatprep.subr.mxu0 0.0
    %80 = vmatpush1.msra.mxu0 0.0
    %81 = vmatprep.subr.mxu0 0.0
    %82 = vmatpush1.msra.mxu0 %v33
    %83 = vmatprep.subr.mxu0 0.0
    %84 = vmatpush1.msra.mxu0 %v32
    %85 = vmatprep.subr.mxu0 0.0
    %86 = vmatpush1.msra.mxu0 %v31
    %87 = vmatprep.subr.mxu0 0.0
    %88 = vmatpush1.msra.mxu0 %v30
    %89 = vmatprep.subr.mxu0 0.0
    %90 = vmatpush1.msra.mxu0 %v29
    %91 = vmatprep.subr.mxu0 0.0
    %92 = vmatpush1.msra.mxu0 %v28
    %93 = vmatprep.subr.mxu0 0.0
    %94 = vmatpush1.msra.mxu0 %v27
    %95 = vmatprep.subr.mxu0 0.0
    %96 = vmatpush1.msra.mxu0 %v26
    %97 = vmatprep.subr.mxu0 0.0
    %98 = vmatpush1.msra.mxu0 %v25
    %99 = vmatprep.subr.mxu0 0.0
    %100 = vmatpush1.msra.mxu0 %v24
    %101 = vmatprep.subr.mxu0 0.0
    %102 = vmatpush1.msra.mxu0 %v23
    %103 = vmatprep.subr.mxu0 0.0
    %104 = vmatpush1.msra.mxu0 %v22
    %105 = vmatprep.subr.mxu0 0.0
    %106 = vmatpush2.msra.mxu0 0.0
    %107 = vmatprep.subr.mxu0 0.0
    %108 = vmatpush2.msra.mxu0 0.0
    %109 = vmatprep.subr.mxu0 0.0
    %110 = vmatpush2.msra.mxu0 0.0
    %111 = vmatprep.subr.mxu0 0.0
    %112 = vmatpush2.msra.mxu0 0.0
    %113 = vmatprep.subr.mxu0 0.0
    %114 = vmatpush2.msra.mxu0 0.0
    %115 = vmatprep.subr.mxu0 0.0
    %116 = vmatpush2.msra.mxu0 0.0
    %117 = vmatprep.subr.mxu0 0.0
    %118 = vmatpush2.msra.mxu0 0.0
    %119 = vmatprep.subr.mxu0 0.0
    %120 = vmatpush2.msra.mxu0 0.0
    %121 = vmatprep.subr.mxu0 0.0
    %122 = vmatpush2.msra.mxu0 0.0
    %123 = vmatprep.subr.mxu0 0.0
    %124 = vmatpush2.msra.mxu0 0.0
    %125 = vmatprep.subr.mxu0 0.0
    %126 = vmatpush2.msra.mxu0 0.0
    %127 = vmatprep.subr.mxu0 0.0
    %128 = vmatpush2.msra.mxu0 0.0
    %129 = vmatprep.subr.mxu0 0.0
    %130 = vmatpush2.msra.mxu0 0.0
    %131 = vmatprep.subr.mxu0 0.0
    %132 = vmatpush2.msra.mxu0 0.0
    %133 = vmatprep.subr.mxu0 0.0
    %134 = vmatpush2.msra.mxu0 0.0
    %135 = vmatprep.subr.mxu0 0.0
    %136 = vmatpush2.msra.mxu0 0.0
    %137 = vmatprep.mubr.f32.mxu0 0.0
    %138 = vmatmul.mubr.f32.gmra.mxu0 %v68
    %v139 = vpop.f32.mrf.mxu0
    %v140 = vadd.f32 %v65, %v139
    %v141 = vpop.f32.mrf.mxu0
    %142 = vmatprep.mubr.f32.mxu0 0.0
    %143 = vmatmul.mubr.f32.gmra.mxu0 %v71
    %v144 = vpop.f32.mrf.mxu0
    %v145 = vadd.f32 %v65, %v144
    %v146 = vpop.f32.mrf.mxu0
    %147 = vdwg.mxu0
    %v148 = vmax.f32 %v140, 0.0
    %v149 = vmax.f32 %v145, 0.0
    %v150 = vlaneseq
    %v151 = vshrl.u32 %v150, 7
    %v152 = vsub.s32 0, %v151
    %v153 = vrot.slane %v57, %v152
    %vm154 = vcmask 392192
    %v156 = vsel %vm154, %v148, 0
    %v159 = vsel %vm154, %v149, 0
    %161 = vmatprep.subr.mxu0 0.0
    %162 = vmatpush1.msra.mxu0 0.0
    %163 = vmatprep.subr.mxu0 0.0
    %164 = vmatpush1.msra.mxu0 0.0
    %165 = vmatprep.subr.mxu0 0.0
    %166 = vmatpush1.msra.mxu0 0.0
    %167 = vmatprep.subr.mxu0 0.0
    %168 = vmatpush1.msra.mxu0 0.0
    %169 = vmatprep.subr.mxu0 0.0
    %170 = vmatpush1.msra.mxu0 0.0
    %171 = vmatprep.subr.mxu0 0.0
    %172 = vmatpush1.msra.mxu0 0.0
    %173 = vmatprep.subr.mxu0 0.0
    %174 = vmatpush1.msra.mxu0 0.0
    %175 = vmatprep.subr.mxu0 0.0
    %176 = vmatpush1.msra.mxu0 0.0
    %177 = vmatprep.subr.mxu0 0.0
    %178 = vmatpush1.msra.mxu0 0.0
    %179 = vmatprep.subr.mxu0 0.0
    %180 = vmatpush1.msra.mxu0 0.0
    %181 = vmatprep.subr.mxu0 0.0
    %182 = vmatpush1.msra.mxu0 %v39
    %183 = vmatprep.subr.mxu0 0.0
    %184 = vmatpush1.msra.mxu0 %v38
    %185 = vmatprep.subr.mxu0 0.0
    %186 = vmatpush1.msra.mxu0 %v37
    %187 = vmatprep.subr.mxu0 0.0
    %188 = vmatpush1.msra.mxu0 %v36
    %189 = vmatprep.subr.mxu0 0.0
    %190 = vmatpush1.msra.mxu0 %v35
    %191 = vmatprep.subr.mxu0 0.0
    %192 = vmatpush1.msra.mxu0 %v34
    %193 = vmatprep.subr.mxu0 0.0
    %194 = vmatpush2.msra.mxu0 0.0
    %195 = vmatprep.subr.mxu0 0.0
    %196 = vmatpush2.msra.mxu0 0.0
    %197 = vmatprep.subr.mxu0 0.0
    %198 = vmatpush2.msra.mxu0 0.0
    %199 = vmatprep.subr.mxu0 0.0
    %200 = vmatpush2.msra.mxu0 0.0
    %201 = vmatprep.subr.mxu0 0.0
    %202 = vmatpush2.msra.mxu0 0.0
    %203 = vmatprep.subr.mxu0 0.0
    %204 = vmatpush2.msra.mxu0 0.0
    %205 = vmatprep.subr.mxu0 0.0
    %206 = vmatpush2.msra.mxu0 0.0
    %207 = vmatprep.subr.mxu0 0.0
    %208 = vmatpush2.msra.mxu0 0.0
    %209 = vmatprep.subr.mxu0 0.0
    %210 = vmatpush2.msra.mxu0 0.0
    %211 = vmatprep.subr.mxu0 0.0
    %212 = vmatpush2.msra.mxu0 0.0
    %213 = vmatprep.subr.mxu0 0.0
    %214 = vmatpush2.msra.mxu0 0.0
    %215 = vmatprep.subr.mxu0 0.0
    %216 = vmatpush2.msra.mxu0 0.0
    %217 = vmatprep.subr.mxu0 0.0
    %218 = vmatpush2.msra.mxu0 0.0
    %219 = vmatprep.subr.mxu0 0.0
    %220 = vmatpush2.msra.mxu0 0.0
    %221 = vmatprep.subr.mxu0 0.0
    %222 = vmatpush2.msra.mxu0 0.0
    %223 = vmatprep.subr.mxu0 0.0
    %224 = vmatpush2.msra.mxu0 0.0
    %225 = vmatprep.mubr.f32.mxu0 0.0
    %226 = vmatmul.mubr.f32.gmra.mxu0 %v156
    %v227 = vpop.f32.mrf.mxu0
    %v228 = vadd.f32 %v153, %v227
    %v229 = vpop.f32.mrf.mxu0
    %230 = vmatprep.mubr.f32.mxu0 0.0
    %231 = vmatmul.mubr.f32.gmra.mxu0 %v159
    %v232 = vpop.f32.mrf.mxu0
    %v233 = vadd.f32 %v153, %v232
    %v234 = vpop.f32.mrf.mxu0
    %235 = vdwg.mxu0
    %v236 = vxor.u32 %v228, 2147483648
    %v237 = vxor.u32 %v233, 2147483648
    %v238 = vmul.f32 %v236, 1.442695
    %v239 = vpow.pop %v238
    %v240 = vmul.f32 %v237, 1.442695
    %v241 = vpow.pop %v240
    %v242 = vadd.f32 %v239, 1.0
    %v243 = vadd.f32 %v241, 1.0
    %v244 = vrcp.pop %v242
    %v245 = vmul.f32 1.0, %v244
    %v246 = vrcp.pop %v243
    %v247 = vmul.f32 1.0, %v246
    %v248 = vmul.f32 %v18, %v245
    %v249 = vmul.f32 %v19, %v247
    %v250 = vlaneseq
    %v251 = vshrl.u32 %v250, 7
    %v252 = vsub.s32 0, %v251
    %v253 = vrot.slane %v58, %v252
    %v255 = vsel %vm66, %v248, 0
    %v258 = vsel %vm66, %v249, 0
    %260 = vmatprep.subr.mxu0 0.0
    %261 = vmatpush1.msra.mxu0 0.0
    %262 = vmatprep.subr.mxu0 0.0
    %263 = vmatpush1.msra.mxu0 0.0
    %264 = vmatprep.subr.mxu0 0.0
    %265 = vmatpush1.msra.mxu0 0.0
    %266 = vmatprep.subr.mxu0 0.0
    %267 = vmatpush1.msra.mxu0 0.0
    %268 = vmatprep.subr.mxu0 0.0
    %269 = vmatpush1.msra.mxu0 %v51
    %270 = vmatprep.subr.mxu0 0.0
    %271 = vmatpush1.msra.mxu0 %v50
    %272 = vmatprep.subr.mxu0 0.0
    %273 = vmatpush1.msra.mxu0 %v49
    %274 = vmatprep.subr.mxu0 0.0
    %275 = vmatpush1.msra.mxu0 %v48
    %276 = vmatprep.subr.mxu0 0.0
    %277 = vmatpush1.msra.mxu0 %v47
    %278 = vmatprep.subr.mxu0 0.0
    %279 = vmatpush1.msra.mxu0 %v46
    %280 = vmatprep.subr.mxu0 0.0
    %281 = vmatpush1.msra.mxu0 %v45
    %282 = vmatprep.subr.mxu0 0.0
    %283 = vmatpush1.msra.mxu0 %v44
    %284 = vmatprep.subr.mxu0 0.0
    %285 = vmatpush1.msra.mxu0 %v43
    %286 = vmatprep.subr.mxu0 0.0
    %287 = vmatpush1.msra.mxu0 %v42
    %288 = vmatprep.subr.mxu0 0.0
    %289 = vmatpush1.msra.mxu0 %v41
    %290 = vmatprep.subr.mxu0 0.0
    %291 = vmatpush1.msra.mxu0 %v40
    %292 = vmatprep.subr.mxu0 0.0
    %293 = vmatpush2.msra.mxu0 0.0
    %294 = vmatprep.subr.mxu0 0.0
    %295 = vmatpush2.msra.mxu0 0.0
    %296 = vmatprep.subr.mxu0 0.0
    %297 = vmatpush2.msra.mxu0 0.0
    %298 = vmatprep.subr.mxu0 0.0
    %299 = vmatpush2.msra.mxu0 0.0
    %300 = vmatprep.subr.mxu0 0.0
    %301 = vmatpush2.msra.mxu0 0.0
    %302 = vmatprep.subr.mxu0 0.0
    %303 = vmatpush2.msra.mxu0 0.0
    %304 = vmatprep.subr.mxu0 0.0
    %305 = vmatpush2.msra.mxu0 0.0
    %306 = vmatprep.subr.mxu0 0.0
    %307 = vmatpush2.msra.mxu0 0.0
    %308 = vmatprep.subr.mxu0 0.0
    %309 = vmatpush2.msra.mxu0 0.0
    %310 = vmatprep.subr.mxu0 0.0
    %311 = vmatpush2.msra.mxu0 0.0
    %312 = vmatprep.subr.mxu0 0.0
    %313 = vmatpush2.msra.mxu0 0.0
    %314 = vmatprep.subr.mxu0 0.0
    %315 = vmatpush2.msra.mxu0 0.0
    %316 = vmatprep.subr.mxu0 0.0
    %317 = vmatpush2.msra.mxu0 0.0
    %318 = vmatprep.subr.mxu0 0.0
    %319 = vmatpush2.msra.mxu0 0.0
    %320 = vmatprep.subr.mxu0 0.0
    %321 = vmatpush2.msra.mxu0 0.0
    %322 = vmatprep.subr.mxu0 0.0
    %323 = vmatpush2.msra.mxu0 0.0
    %324 = vmatprep.mubr.f32.mxu0 0.0
    %325 = vmatmul.mubr.f32.gmra.mxu0 %v255
    %v326 = vpop.f32.mrf.mxu0
    %v327 = vadd.f32 %v253, %v326
    %v328 = vpop.f32.mrf.mxu0
    %329 = vmatprep.mubr.f32.mxu0 0.0
    %330 = vmatmul.mubr.f32.gmra.mxu0 %v258
    %v331 = vpop.f32.mrf.mxu0
    %v332 = vadd.f32 %v253, %v331
    %v333 = vpop.f32.mrf.mxu0
    %334 = vdwg.mxu0
    %337 = vrot.lane.b32.xlu0 %v327, 96
    %v338 = vpop.permute.xlu0 %337
    %339 = vrot.lane.b32.xlu0 %v332, 96
    %v340 = vpop.permute.xlu0 %339
    %vm341 = vcmask 64512
    %v342 = vsel %vm341, %v327, 0
    %v344 = vsel %vm341, %v332, 0
    %v346 = vsel %vm341, %v338, 0
    %v348 = vsel %vm341, %v340, 0
    %350 = vmatprep.subr.mxu0 0.0
    %351 = vmatpush1.xpose.msra.mxu0 0.0
    %352 = vmatprep.subr.mxu0 0.0
    %353 = vmatpush1.xpose.msra.mxu0 0.0
    %354 = vmatprep.subr.mxu0 0.0
    %355 = vmatpush1.xpose.msra.mxu0 0.0
    %356 = vmatprep.subr.mxu0 0.0
    %357 = vmatpush1.xpose.msra.mxu0 0.0
    %358 = vmatprep.subr.mxu0 0.0
    %359 = vmatpush1.xpose.msra.mxu0 0.0
    %360 = vmatprep.subr.mxu0 0.0
    %361 = vmatpush1.xpose.msra.mxu0 0.0
    %362 = vmatprep.subr.mxu0 0.0
    %363 = vmatpush1.xpose.msra.mxu0 0.0
    %364 = vmatprep.subr.mxu0 0.0
    %365 = vmatpush1.xpose.msra.mxu0 0.0
    %366 = vmatprep.subr.mxu0 0.0
    %367 = vmatpush1.xpose.msra.mxu0 0.0
    %368 = vmatprep.subr.mxu0 0.0
    %369 = vmatpush1.xpose.msra.mxu0 0.0
    %370 = vmatprep.subr.mxu0 0.0
    %371 = vmatpush1.xpose.msra.mxu0 0.0
    %372 = vmatprep.subr.mxu0 0.0
    %373 = vmatpush1.xpose.msra.mxu0 0.0
    %374 = vmatprep.subr.mxu0 0.0
    %375 = vmatpush1.xpose.msra.mxu0 0.0
    %376 = vmatprep.subr.mxu0 0.0
    %377 = vmatpush1.xpose.msra.mxu0 0.0
    %378 = vmatprep.subr.mxu0 0.0
    %379 = vmatpush1.xpose.msra.mxu0 %v348
    %380 = vmatprep.subr.mxu0 0.0
    %381 = vmatpush1.xpose.msra.mxu0 %v346
    %382 = vmatprep.subr.mxu0 0.0
    %383 = vmatpush2.xpose.msra.mxu0 0.0
    %384 = vmatprep.subr.mxu0 0.0
    %385 = vmatpush2.xpose.msra.mxu0 0.0
    %386 = vmatprep.subr.mxu0 0.0
    %387 = vmatpush2.xpose.msra.mxu0 0.0
    %388 = vmatprep.subr.mxu0 0.0
    %389 = vmatpush2.xpose.msra.mxu0 0.0
    %390 = vmatprep.subr.mxu0 0.0
    %391 = vmatpush2.xpose.msra.mxu0 0.0
    %392 = vmatprep.subr.mxu0 0.0
    %393 = vmatpush2.xpose.msra.mxu0 0.0
    %394 = vmatprep.subr.mxu0 0.0
    %395 = vmatpush2.xpose.msra.mxu0 0.0
    %396 = vmatprep.subr.mxu0 0.0
    %397 = vmatpush2.xpose.msra.mxu0 0.0
    %398 = vmatprep.subr.mxu0 0.0
    %399 = vmatpush2.xpose.msra.mxu0 0.0
    %400 = vmatprep.subr.mxu0 0.0
    %401 = vmatpush2.xpose.msra.mxu0 0.0
    %402 = vmatprep.subr.mxu0 0.0
    %403 = vmatpush2.xpose.msra.mxu0 0.0
    %404 = vmatprep.subr.mxu0 0.0
    %405 = vmatpush2.xpose.msra.mxu0 0.0
    %406 = vmatprep.subr.mxu0 0.0
    %407 = vmatpush2.xpose.msra.mxu0 0.0
    %408 = vmatprep.subr.mxu0 0.0
    %409 = vmatpush2.xpose.msra.mxu0 0.0
    %410 = vmatprep.subr.mxu0 0.0
    %411 = vmatpush2.xpose.msra.mxu0 0.0
    %412 = vmatprep.subr.mxu0 0.0
    %413 = vmatpush2.xpose.msra.mxu0 0.0
    %414 = vmatprep.mubr.f32.mxu0 0.0
    %415 = vmatmul.mubr.f32.gmra.mxu0 %v342
    %v416 = vpop.f32.mrf.mxu0
    %v417 = vadd.f32 0.0, %v416
    %v418 = vpop.f32.mrf.mxu0
    %419 = vmatprep.mubr.f32.mxu0 0.0
    %420 = vmatmul.mubr.f32.gmra.mxu0 %v344
    %v421 = vpop.f32.mrf.mxu0
    %v422 = vadd.f32 0.0, %v421
    %v423 = vpop.f32.mrf.mxu0
    %424 = vdwg.mxu0
    %v425 = vmul.f32 %v417, 0.35355338
    %v426 = vmul.f32 %v422, 0.35355338
    %v427 = vadd.f32 %v425, %v20
    %v428 = vadd.f32 %v426, %v21
    %vm429 = vcmask 130048
    %v430 = vsel %vm429, %v427, -inf
    %431 = vmax.xlane.f32.xlu0 %v430
    %v432 = vpop.xlane.xlu0 %431
    %v433 = vsel %vm429, %v428, -inf
    %434 = vmax.xlane.f32.xlu0 %v433
    %v435 = vpop.xlane.xlu0 %434
    %v436 = vsub.f32 %v427, %v432
    %v437 = vsub.f32 %v428, %v435
    %v438 = vmul.f32 %v436, 1.442695
    %v439 = vpow.pop %v438
    %v440 = vmul.f32 %v437, 1.442695
    %v441 = vpow.pop %v440
    %v442 = vsel %vm429, %v439, 0.0
    %443 = vadd.xlane.f32.xlu0 %v442
    %v444 = vpop.xlane.xlu0 %443
    %v445 = vsel %vm429, %v441, 0.0
    %446 = vadd.xlane.f32.xlu0 %v445
    %v447 = vpop.xlane.xlu0 %446
    %v448 = vrcp.pop %v444
    %v449 = vrcp.pop %v447
    %v450 = vmul.f32 %v439, %v448
    %v451 = vmul.f32 %v441, %v449
    %452 = vrot.lane.b32.xlu0 %v327, 64
    %v453 = vpop.permute.xlu0 %452
    %454 = vrot.lane.b32.xlu0 %v332, 64
    %v455 = vpop.permute.xlu0 %454
    %v459 = vsel %vm429, %v450, 0
    %v462 = vsel %vm429, %v451, 0
    %464 = vmatprep.subr.mxu0 0.0
    %465 = vmatpush1.msra.mxu0 0.0
    %466 = vmatprep.subr.mxu0 0.0
    %467 = vmatpush1.msra.mxu0 0.0
    %468 = vmatprep.subr.mxu0 0.0
    %469 = vmatpush1.msra.mxu0 0.0
    %470 = vmatprep.subr.mxu0 0.0
    %471 = vmatpush1.msra.mxu0 0.0
    %472 = vmatprep.subr.mxu0 0.0
    %473 = vmatpush1.msra.mxu0 0.0
    %474 = vmatprep.subr.mxu0 0.0
    %475 = vmatpush1.msra.mxu0 0.0
    %476 = vmatprep.subr.mxu0 0.0
    %477 = vmatpush1.msra.mxu0 0.0
    %478 = vmatprep.subr.mxu0 0.0
    %479 = vmatpush1.msra.mxu0 0.0
    %480 = vmatprep.subr.mxu0 0.0
    %481 = vmatpush1.msra.mxu0 0.0
    %482 = vmatprep.subr.mxu0 0.0
    %483 = vmatpush1.msra.mxu0 0.0
    %484 = vmatprep.subr.mxu0 0.0
    %485 = vmatpush1.msra.mxu0 0.0
    %486 = vmatprep.subr.mxu0 0.0
    %487 = vmatpush1.msra.mxu0 0.0
    %488 = vmatprep.subr.mxu0 0.0
    %489 = vmatpush1.msra.mxu0 0.0
    %490 = vmatprep.subr.mxu0 0.0
    %491 = vmatpush1.msra.mxu0 0.0
    %492 = vmatprep.subr.mxu0 0.0
    %493 = vmatpush1.msra.mxu0 %v455
    %494 = vmatprep.subr.mxu0 0.0
    %495 = vmatpush1.msra.mxu0 %v453
    %496 = vmatprep.subr.mxu0 0.0
    %497 = vmatpush2.msra.mxu0 0.0
    %498 = vmatprep.subr.mxu0 0.0
    %499 = vmatpush2.msra.mxu0 0.0
    %500 = vmatprep.subr.mxu0 0.0
    %501 = vmatpush2.msra.mxu0 0.0
    %502 = vmatprep.subr.mxu0 0.0
    %503 = vmatpush2.msra.mxu0 0.0
    %504 = vmatprep.subr.mxu0 0.0
    %505 = vmatpush2.msra.mxu0 0.0
    %506 = vmatprep.subr.mxu0 0.0
    %507 = vmatpush2.msra.mxu0 0.0
    %508 = vmatprep.subr.mxu0 0.0
    %509 = vmatpush2.msra.mxu0 0.0
    %510 = vmatprep.subr.mxu0 0.0
    %511 = vmatpush2.msra.mxu0 0.0
    %512 = vmatprep.subr.mxu0 0.0
    %513 = vmatpush2.msra.mxu0 0.0
    %514 = vmatprep.subr.mxu0 0.0
    %515 = vmatpush2.msra.mxu0 0.0
    %516 = vmatprep.subr.mxu0 0.0
    %517 = vmatpush2.msra.mxu0 0.0
    %518 = vmatprep.subr.mxu0 0.0
    %519 = vmatpush2.msra.mxu0 0.0
    %520 = vmatprep.subr.mxu0 0.0
    %521 = vmatpush2.msra.mxu0 0.0
    %522 = vmatprep.subr.mxu0 0.0
    %523 = vmatpush2.msra.mxu0 0.0
    %524 = vmatprep.subr.mxu0 0.0
    %525 = vmatpush2.msra.mxu0 0.0
    %526 = vmatprep.subr.mxu0 0.0
    %527 = vmatpush2.msra.mxu0 0.0
    %528 = vmatprep.mubr.f32.mxu0 0.0
    %529 = vmatmul.mubr.f32.gmra.mxu0 %v459
    %v530 = vpop.f32.mrf.mxu0
    %v531 = vadd.f32 0.0, %v530
    %v532 = vpop.f32.mrf.mxu0
    %533 = vmatprep.mubr.f32.mxu0 0.0
    %534 = vmatmul.mubr.f32.gmra.mxu0 %v462
    %v535 = vpop.f32.mrf.mxu0
    %v536 = vadd.f32 0.0, %v535
    %v537 = vpop.f32.mrf.mxu0
    %538 = vdwg.mxu0
    %539 = vrot.lane.b32.xlu0 %v327, 120
    %v540 = vpop.permute.xlu0 %539
    %541 = vrot.lane.b32.xlu0 %v332, 120
    %v542 = vpop.permute.xlu0 %541
    %543 = vrot.lane.b32.xlu0 %v327, 88
    %v544 = vpop.permute.xlu0 %543
    %545 = vrot.lane.b32.xlu0 %v332, 88
    %v546 = vpop.permute.xlu0 %545
    %v547 = vsel %vm341, %v540, 0
    %v549 = vsel %vm341, %v542, 0
    %v551 = vsel %vm341, %v544, 0
    %v553 = vsel %vm341, %v546, 0
    %555 = vmatprep.subr.mxu0 0.0
    %556 = vmatpush1.xpose.msra.mxu0 0.0
    %557 = vmatprep.subr.mxu0 0.0
    %558 = vmatpush1.xpose.msra.mxu0 0.0
    %559 = vmatprep.subr.mxu0 0.0
    %560 = vmatpush1.xpose.msra.mxu0 0.0
    %561 = vmatprep.subr.mxu0 0.0
    %562 = vmatpush1.xpose.msra.mxu0 0.0
    %563 = vmatprep.subr.mxu0 0.0
    %564 = vmatpush1.xpose.msra.mxu0 0.0
    %565 = vmatprep.subr.mxu0 0.0
    %566 = vmatpush1.xpose.msra.mxu0 0.0
    %567 = vmatprep.subr.mxu0 0.0
    %568 = vmatpush1.xpose.msra.mxu0 0.0
    %569 = vmatprep.subr.mxu0 0.0
    %570 = vmatpush1.xpose.msra.mxu0 0.0
    %571 = vmatprep.subr.mxu0 0.0
    %572 = vmatpush1.xpose.msra.mxu0 0.0
    %573 = vmatprep.subr.mxu0 0.0
    %574 = vmatpush1.xpose.msra.mxu0 0.0
    %575 = vmatprep.subr.mxu0 0.0
    %576 = vmatpush1.xpose.msra.mxu0 0.0
    %577 = vmatprep.subr.mxu0 0.0
    %578 = vmatpush1.xpose.msra.mxu0 0.0
    %579 = vmatprep.subr.mxu0 0.0
    %580 = vmatpush1.xpose.msra.mxu0 0.0
    %581 = vmatprep.subr.mxu0 0.0
    %582 = vmatpush1.xpose.msra.mxu0 0.0
    %583 = vmatprep.subr.mxu0 0.0
    %584 = vmatpush1.xpose.msra.mxu0 %v553
    %585 = vmatprep.subr.mxu0 0.0
    %586 = vmatpush1.xpose.msra.mxu0 %v551
    %587 = vmatprep.subr.mxu0 0.0
    %588 = vmatpush2.xpose.msra.mxu0 0.0
    %589 = vmatprep.subr.mxu0 0.0
    %590 = vmatpush2.xpose.msra.mxu0 0.0
    %591 = vmatprep.subr.mxu0 0.0
    %592 = vmatpush2.xpose.msra.mxu0 0.0
    %593 = vmatprep.subr.mxu0 0.0
    %594 = vmatpush2.xpose.msra.mxu0 0.0
    %595 = vmatprep.subr.mxu0 0.0
    %596 = vmatpush2.xpose.msra.mxu0 0.0
    %597 = vmatprep.subr.mxu0 0.0
    %598 = vmatpush2.xpose.msra.mxu0 0.0
    %599 = vmatprep.subr.mxu0 0.0
    %600 = vmatpush2.xpose.msra.mxu0 0.0
    %601 = vmatprep.subr.mxu0 0.0
    %602 = vmatpush2.xpose.msra.mxu0 0.0
    %603 = vmatprep.subr.mxu0 0.0
    %604 = vmatpush2.xpose.msra.mxu0 0.0
    %605 = vmatprep.subr.mxu0 0.0
    %606 = vmatpush2.xpose.msra.mxu0 0.0
    %607 = vmatprep.subr.mxu0 0.0
    %608 = vmatpush2.xpose.msra.mxu0 0.0
    %609 = vmatprep.subr.mxu0 0.0
    %610 = vmatpush2.xpose.msra.mxu0 0.0
    %611 = vmatprep.subr.mxu0 0.0
    %612 = vmatpush2.xpose.msra.mxu0 0.0
    %613 = vmatprep.subr.mxu0 0.0
    %614 = vmatpush2.xpose.msra.mxu0 0.0
    %615 = vmatprep.subr.mxu0 0.0
    %616 = vmatpush2.xpose.msra.mxu0 0.0
    %617 = vmatprep.subr.mxu0 0.0
    %618 = vmatpush2.xpose.msra.mxu0 0.0
    %619 = vmatprep.mubr.f32.mxu0 0.0
    %620 = vmatmul.mubr.f32.gmra.mxu0 %v547
    %v621 = vpop.f32.mrf.mxu0
    %v622 = vadd.f32 0.0, %v621
    %v623 = vpop.f32.mrf.mxu0
    %624 = vmatprep.mubr.f32.mxu0 0.0
    %625 = vmatmul.mubr.f32.gmra.mxu0 %v549
    %v626 = vpop.f32.mrf.mxu0
    %v627 = vadd.f32 0.0, %v626
    %v628 = vpop.f32.mrf.mxu0
    %629 = vdwg.mxu0
    %v630 = vmul.f32 %v622, 0.35355338
    %v631 = vmul.f32 %v627, 0.35355338
    %v632 = vadd.f32 %v630, %v20
    %v633 = vadd.f32 %v631, %v21
    %v634 = vsel %vm429, %v632, -inf
    %635 = vmax.xlane.f32.xlu0 %v634
    %v636 = vpop.xlane.xlu0 %635
    %v637 = vsel %vm429, %v633, -inf
    %638 = vmax.xlane.f32.xlu0 %v637
    %v639 = vpop.xlane.xlu0 %638
    %v640 = vsub.f32 %v632, %v636
    %v641 = vsub.f32 %v633, %v639
    %v642 = vmul.f32 %v640, 1.442695
    %v643 = vpow.pop %v642
    %v644 = vmul.f32 %v641, 1.442695
    %v645 = vpow.pop %v644
    %v646 = vsel %vm429, %v643, 0.0
    %647 = vadd.xlane.f32.xlu0 %v646
    %v648 = vpop.xlane.xlu0 %647
    %v649 = vsel %vm429, %v645, 0.0
    %650 = vadd.xlane.f32.xlu0 %v649
    %v651 = vpop.xlane.xlu0 %650
    %v652 = vrcp.pop %v648
    %v653 = vrcp.pop %v651
    %v654 = vmul.f32 %v643, %v652
    %v655 = vmul.f32 %v645, %v653
    %656 = vrot.lane.b32.xlu0 %v327, 56
    %v657 = vpop.permute.xlu0 %656
    %658 = vrot.lane.b32.xlu0 %v332, 56
    %v659 = vpop.permute.xlu0 %658
    %v663 = vsel %vm429, %v654, 0
    %v666 = vsel %vm429, %v655, 0
    %668 = vmatprep.subr.mxu0 0.0
    %669 = vmatpush1.msra.mxu0 0.0
    %670 = vmatprep.subr.mxu0 0.0
    %671 = vmatpush1.msra.mxu0 0.0
    %672 = vmatprep.subr.mxu0 0.0
    %673 = vmatpush1.msra.mxu0 0.0
    %674 = vmatprep.subr.mxu0 0.0
    %675 = vmatpush1.msra.mxu0 0.0
    %676 = vmatprep.subr.mxu0 0.0
    %677 = vmatpush1.msra.mxu0 0.0
    %678 = vmatprep.subr.mxu0 0.0
    %679 = vmatpush1.msra.mxu0 0.0
    %680 = vmatprep.subr.mxu0 0.0
    %681 = vmatpush1.msra.mxu0 0.0
    %682 = vmatprep.subr.mxu0 0.0
    %683 = vmatpush1.msra.mxu0 0.0
    %684 = vmatprep.subr.mxu0 0.0
    %685 = vmatpush1.msra.mxu0 0.0
    %686 = vmatprep.subr.mxu0 0.0
    %687 = vmatpush1.msra.mxu0 0.0
    %688 = vmatprep.subr.mxu0 0.0
    %689 = vmatpush1.msra.mxu0 0.0
    %690 = vmatprep.subr.mxu0 0.0
    %691 = vmatpush1.msra.mxu0 0.0
    %692 = vmatprep.subr.mxu0 0.0
    %693 = vmatpush1.msra.mxu0 0.0
    %694 = vmatprep.subr.mxu0 0.0
    %695 = vmatpush1.msra.mxu0 0.0
    %696 = vmatprep.subr.mxu0 0.0
    %697 = vmatpush1.msra.mxu0 %v659
    %698 = vmatprep.subr.mxu0 0.0
    %699 = vmatpush1.msra.mxu0 %v657
    %700 = vmatprep.subr.mxu0 0.0
    %701 = vmatpush2.msra.mxu0 0.0
    %702 = vmatprep.subr.mxu0 0.0
    %703 = vmatpush2.msra.mxu0 0.0
    %704 = vmatprep.subr.mxu0 0.0
    %705 = vmatpush2.msra.mxu0 0.0
    %706 = vmatprep.subr.mxu0 0.0
    %707 = vmatpush2.msra.mxu0 0.0
    %708 = vmatprep.subr.mxu0 0.0
    %709 = vmatpush2.msra.mxu0 0.0
    %710 = vmatprep.subr.mxu0 0.0
    %711 = vmatpush2.msra.mxu0 0.0
    %712 = vmatprep.subr.mxu0 0.0
    %713 = vmatpush2.msra.mxu0 0.0
    %714 = vmatprep.subr.mxu0 0.0
    %715 = vmatpush2.msra.mxu0 0.0
    %716 = vmatprep.subr.mxu0 0.0
    %717 = vmatpush2.msra.mxu0 0.0
    %718 = vmatprep.subr.mxu0 0.0
    %719 = vmatpush2.msra.mxu0 0.0
    %720 = vmatprep.subr.mxu0 0.0
    %721 = vmatpush2.msra.mxu0 0.0
    %722 = vmatprep.subr.mxu0 0.0
    %723 = vmatpush2.msra.mxu0 0.0
    %724 = vmatprep.subr.mxu0 0.0
    %725 = vmatpush2.msra.mxu0 0.0
    %726 = vmatprep.subr.mxu0 0.0
    %727 = vmatpush2.msra.mxu0 0.0
    %728 = vmatprep.subr.mxu0 0.0
    %729 = vmatpush2.msra.mxu0 0.0
    %730 = vmatprep.subr.mxu0 0.0
    %731 = vmatpush2.msra.mxu0 0.0
    %732 = vmatprep.mubr.f32.mxu0 0.0
    %733 = vmatmul.mubr.f32.gmra.mxu0 %v663
    %v734 = vpop.f32.mrf.mxu0
    %v735 = vadd.f32 0.0, %v734
    %v736 = vpop.f32.mrf.mxu0
    %737 = vmatprep.mubr.f32.mxu0 0.0
    %738 = vmatmul.mubr.f32.gmra.mxu0 %v666
    %v739 = vpop.f32.mrf.mxu0
    %v740 = vadd.f32 0.0, %v739
    %v741 = vpop.f32.mrf.mxu0
    %742 = vdwg.mxu0
    %743 = vrot.lane.b32.xlu0 %v327, 112
    %v744 = vpop.permute.xlu0 %743
    %745 = vrot.lane.b32.xlu0 %v332, 112
    %v746 = vpop.permute.xlu0 %745
    %747 = vrot.lane.b32.xlu0 %v327, 80
    %v748 = vpop.permute.xlu0 %747
    %749 = vrot.lane.b32.xlu0 %v332, 80
    %v750 = vpop.permute.xlu0 %749
    %v751 = vsel %vm341, %v744, 0
    %v753 = vsel %vm341, %v746, 0
    %v755 = vsel %vm341, %v748, 0
    %v757 = vsel %vm341, %v750, 0
    %759 = vmatprep.subr.mxu0 0.0
    %760 = vmatpush1.xpose.msra.mxu0 0.0
    %761 = vmatprep.subr.mxu0 0.0
    %762 = vmatpush1.xpose.msra.mxu0 0.0
    %763 = vmatprep.subr.mxu0 0.0
    %764 = vmatpush1.xpose.msra.mxu0 0.0
    %765 = vmatprep.subr.mxu0 0.0
    %766 = vmatpush1.xpose.msra.mxu0 0.0
    %767 = vmatprep.subr.mxu0 0.0
    %768 = vmatpush1.xpose.msra.mxu0 0.0
    %769 = vmatprep.subr.mxu0 0.0
    %770 = vmatpush1.xpose.msra.mxu0 0.0
    %771 = vmatprep.subr.mxu0 0.0
    %772 = vmatpush1.xpose.msra.mxu0 0.0
    %773 = vmatprep.subr.mxu0 0.0
    %774 = vmatpush1.xpose.msra.mxu0 0.0
    %775 = vmatprep.subr.mxu0 0.0
    %776 = vmatpush1.xpose.msra.mxu0 0.0
    %777 = vmatprep.subr.mxu0 0.0
    %778 = vmatpush1.xpose.msra.mxu0 0.0
    %779 = vmatprep.subr.mxu0 0.0
    %780 = vmatpush1.xpose.msra.mxu0 0.0
    %781 = vmatprep.subr.mxu0 0.0
    %782 = vmatpush1.xpose.msra.mxu0 0.0
    %783 = vmatprep.subr.mxu0 0.0
    %784 = vmatpush1.xpose.msra.mxu0 0.0
    %785 = vmatprep.subr.mxu0 0.0
    %786 = vmatpush1.xpose.msra.mxu0 0.0
    %787 = vmatprep.subr.mxu0 0.0
    %788 = vmatpush1.xpose.msra.mxu0 %v757
    %789 = vmatprep.subr.mxu0 0.0
    %790 = vmatpush1.xpose.msra.mxu0 %v755
    %791 = vmatprep.subr.mxu0 0.0
    %792 = vmatpush2.xpose.msra.mxu0 0.0
    %793 = vmatprep.subr.mxu0 0.0
    %794 = vmatpush2.xpose.msra.mxu0 0.0
    %795 = vmatprep.subr.mxu0 0.0
    %796 = vmatpush2.xpose.msra.mxu0 0.0
    %797 = vmatprep.subr.mxu0 0.0
    %798 = vmatpush2.xpose.msra.mxu0 0.0
    %799 = vmatprep.subr.mxu0 0.0
    %800 = vmatpush2.xpose.msra.mxu0 0.0
    %801 = vmatprep.subr.mxu0 0.0
    %802 = vmatpush2.xpose.msra.mxu0 0.0
    %803 = vmatprep.subr.mxu0 0.0
    %804 = vmatpush2.xpose.msra.mxu0 0.0
    %805 = vmatprep.subr.mxu0 0.0
    %806 = vmatpush2.xpose.msra.mxu0 0.0
    %807 = vmatprep.subr.mxu0 0.0
    %808 = vmatpush2.xpose.msra.mxu0 0.0
    %809 = vmatprep.subr.mxu0 0.0
    %810 = vmatpush2.xpose.msra.mxu0 0.0
    %811 = vmatprep.subr.mxu0 0.0
    %812 = vmatpush2.xpose.msra.mxu0 0.0
    %813 = vmatprep.subr.mxu0 0.0
    %814 = vmatpush2.xpose.msra.mxu0 0.0
    %815 = vmatprep.subr.mxu0 0.0
    %816 = vmatpush2.xpose.msra.mxu0 0.0
    %817 = vmatprep.subr.mxu0 0.0
    %818 = vmatpush2.xpose.msra.mxu0 0.0
    %819 = vmatprep.subr.mxu0 0.0
    %820 = vmatpush2.xpose.msra.mxu0 0.0
    %821 = vmatprep.subr.mxu0 0.0
    %822 = vmatpush2.xpose.msra.mxu0 0.0
    %823 = vmatprep.mubr.f32.mxu0 0.0
    %824 = vmatmul.mubr.f32.gmra.mxu0 %v751
    %v825 = vpop.f32.mrf.mxu0
    %v826 = vadd.f32 0.0, %v825
    %v827 = vpop.f32.mrf.mxu0
    %828 = vmatprep.mubr.f32.mxu0 0.0
    %829 = vmatmul.mubr.f32.gmra.mxu0 %v753
    %v830 = vpop.f32.mrf.mxu0
    %v831 = vadd.f32 0.0, %v830
    %v832 = vpop.f32.mrf.mxu0
    %833 = vdwg.mxu0
    %v834 = vmul.f32 %v826, 0.35355338
    %v835 = vmul.f32 %v831, 0.35355338
    %v836 = vadd.f32 %v834, %v20
    %v837 = vadd.f32 %v835, %v21
    %v838 = vsel %vm429, %v836, -inf
    %839 = vmax.xlane.f32.xlu0 %v838
    %v840 = vpop.xlane.xlu0 %839
    %v841 = vsel %vm429, %v837, -inf
    %842 = vmax.xlane.f32.xlu0 %v841
    %v843 = vpop.xlane.xlu0 %842
    %v844 = vsub.f32 %v836, %v840
    %v845 = vsub.f32 %v837, %v843
    %v846 = vmul.f32 %v844, 1.442695
    %v847 = vpow.pop %v846
    %v848 = vmul.f32 %v845, 1.442695
    %v849 = vpow.pop %v848
    %v850 = vsel %vm429, %v847, 0.0
    %851 = vadd.xlane.f32.xlu0 %v850
    %v852 = vpop.xlane.xlu0 %851
    %v853 = vsel %vm429, %v849, 0.0
    %854 = vadd.xlane.f32.xlu0 %v853
    %v855 = vpop.xlane.xlu0 %854
    %v856 = vrcp.pop %v852
    %v857 = vrcp.pop %v855
    %v858 = vmul.f32 %v847, %v856
    %v859 = vmul.f32 %v849, %v857
    %860 = vrot.lane.b32.xlu0 %v327, 48
    %v861 = vpop.permute.xlu0 %860
    %862 = vrot.lane.b32.xlu0 %v332, 48
    %v863 = vpop.permute.xlu0 %862
    %v867 = vsel %vm429, %v858, 0
    %v870 = vsel %vm429, %v859, 0
    %872 = vmatprep.subr.mxu0 0.0
    %873 = vmatpush1.msra.mxu0 0.0
    %874 = vmatprep.subr.mxu0 0.0
    %875 = vmatpush1.msra.mxu0 0.0
    %876 = vmatprep.subr.mxu0 0.0
    %877 = vmatpush1.msra.mxu0 0.0
    %878 = vmatprep.subr.mxu0 0.0
    %879 = vmatpush1.msra.mxu0 0.0
    %880 = vmatprep.subr.mxu0 0.0
    %881 = vmatpush1.msra.mxu0 0.0
    %882 = vmatprep.subr.mxu0 0.0
    %883 = vmatpush1.msra.mxu0 0.0
    %884 = vmatprep.subr.mxu0 0.0
    %885 = vmatpush1.msra.mxu0 0.0
    %886 = vmatprep.subr.mxu0 0.0
    %887 = vmatpush1.msra.mxu0 0.0
    %888 = vmatprep.subr.mxu0 0.0
    %889 = vmatpush1.msra.mxu0 0.0
    %890 = vmatprep.subr.mxu0 0.0
    %891 = vmatpush1.msra.mxu0 0.0
    %892 = vmatprep.subr.mxu0 0.0
    %893 = vmatpush1.msra.mxu0 0.0
    %894 = vmatprep.subr.mxu0 0.0
    %895 = vmatpush1.msra.mxu0 0.0
    %896 = vmatprep.subr.mxu0 0.0
    %897 = vmatpush1.msra.mxu0 0.0
    %898 = vmatprep.subr.mxu0 0.0
    %899 = vmatpush1.msra.mxu0 0.0
    %900 = vmatprep.subr.mxu0 0.0
    %901 = vmatpush1.msra.mxu0 %v863
    %902 = vmatprep.subr.mxu0 0.0
    %903 = vmatpush1.msra.mxu0 %v861
    %904 = vmatprep.subr.mxu0 0.0
    %905 = vmatpush2.msra.mxu0 0.0
    %906 = vmatprep.subr.mxu0 0.0
    %907 = vmatpush2.msra.mxu0 0.0
    %908 = vmatprep.subr.mxu0 0.0
    %909 = vmatpush2.msra.mxu0 0.0
    %910 = vmatprep.subr.mxu0 0.0
    %911 = vmatpush2.msra.mxu0 0.0
    %912 = vmatprep.subr.mxu0 0.0
    %913 = vmatpush2.msra.mxu0 0.0
    %914 = vmatprep.subr.mxu0 0.0
    %915 = vmatpush2.msra.mxu0 0.0
    %916 = vmatprep.subr.mxu0 0.0
    %917 = vmatpush2.msra.mxu0 0.0
    %918 = vmatprep.subr.mxu0 0.0
    %919 = vmatpush2.msra.mxu0 0.0
    %920 = vmatprep.subr.mxu0 0.0
    %921 = vmatpush2.msra.mxu0 0.0
    %922 = vmatprep.subr.mxu0 0.0
    %923 = vmatpush2.msra.mxu0 0.0
    %924 = vmatprep.subr.mxu0 0.0
    %925 = vmatpush2.msra.mxu0 0.0
    %926 = vmatprep.subr.mxu0 0.0
    %927 = vmatpush2.msra.mxu0 0.0
    %928 = vmatprep.subr.mxu0 0.0
    %929 = vmatpush2.msra.mxu0 0.0
    %930 = vmatprep.subr.mxu0 0.0
    %931 = vmatpush2.msra.mxu0 0.0
    %932 = vmatprep.subr.mxu0 0.0
    %933 = vmatpush2.msra.mxu0 0.0
    %934 = vmatprep.subr.mxu0 0.0
    %935 = vmatpush2.msra.mxu0 0.0
    %936 = vmatprep.mubr.f32.mxu0 0.0
    %937 = vmatmul.mubr.f32.gmra.mxu0 %v867
    %v938 = vpop.f32.mrf.mxu0
    %v939 = vadd.f32 0.0, %v938
    %v940 = vpop.f32.mrf.mxu0
    %941 = vmatprep.mubr.f32.mxu0 0.0
    %942 = vmatmul.mubr.f32.gmra.mxu0 %v870
    %v943 = vpop.f32.mrf.mxu0
    %v944 = vadd.f32 0.0, %v943
    %v945 = vpop.f32.mrf.mxu0
    %946 = vdwg.mxu0
    %947 = vrot.lane.b32.xlu0 %v327, 104
    %v948 = vpop.permute.xlu0 %947
    %949 = vrot.lane.b32.xlu0 %v332, 104
    %v950 = vpop.permute.xlu0 %949
    %951 = vrot.lane.b32.xlu0 %v327, 72
    %v952 = vpop.permute.xlu0 %951
    %953 = vrot.lane.b32.xlu0 %v332, 72
    %v954 = vpop.permute.xlu0 %953
    %v955 = vsel %vm341, %v948, 0
    %v957 = vsel %vm341, %v950, 0
    %v959 = vsel %vm341, %v952, 0
    %v961 = vsel %vm341, %v954, 0
    %963 = vmatprep.subr.mxu0 0.0
    %964 = vmatpush1.xpose.msra.mxu0 0.0
    %965 = vmatprep.subr.mxu0 0.0
    %966 = vmatpush1.xpose.msra.mxu0 0.0
    %967 = vmatprep.subr.mxu0 0.0
    %968 = vmatpush1.xpose.msra.mxu0 0.0
    %969 = vmatprep.subr.mxu0 0.0
    %970 = vmatpush1.xpose.msra.mxu0 0.0
    %971 = vmatprep.subr.mxu0 0.0
    %972 = vmatpush1.xpose.msra.mxu0 0.0
    %973 = vmatprep.subr.mxu0 0.0
    %974 = vmatpush1.xpose.msra.mxu0 0.0
    %975 = vmatprep.subr.mxu0 0.0
    %976 = vmatpush1.xpose.msra.mxu0 0.0
    %977 = vmatprep.subr.mxu0 0.0
    %978 = vmatpush1.xpose.msra.mxu0 0.0
    %979 = vmatprep.subr.mxu0 0.0
    %980 = vmatpush1.xpose.msra.mxu0 0.0
    %981 = vmatprep.subr.mxu0 0.0
    %982 = vmatpush1.xpose.msra.mxu0 0.0
    %983 = vmatprep.subr.mxu0 0.0
    %984 = vmatpush1.xpose.msra.mxu0 0.0
    %985 = vmatprep.subr.mxu0 0.0
    %986 = vmatpush1.xpose.msra.mxu0 0.0
    %987 = vmatprep.subr.mxu0 0.0
    %988 = vmatpush1.xpose.msra.mxu0 0.0
    %989 = vmatprep.subr.mxu0 0.0
    %990 = vmatpush1.xpose.msra.mxu0 0.0
    %991 = vmatprep.subr.mxu0 0.0
    %992 = vmatpush1.xpose.msra.mxu0 %v961
    %993 = vmatprep.subr.mxu0 0.0
    %994 = vmatpush1.xpose.msra.mxu0 %v959
    %995 = vmatprep.subr.mxu0 0.0
    %996 = vmatpush2.xpose.msra.mxu0 0.0
    %997 = vmatprep.subr.mxu0 0.0
    %998 = vmatpush2.xpose.msra.mxu0 0.0
    %999 = vmatprep.subr.mxu0 0.0
    %1000 = vmatpush2.xpose.msra.mxu0 0.0
    %1001 = vmatprep.subr.mxu0 0.0
    %1002 = vmatpush2.xpose.msra.mxu0 0.0
    %1003 = vmatprep.subr.mxu0 0.0
    %1004 = vmatpush2.xpose.msra.mxu0 0.0
    %1005 = vmatprep.subr.mxu0 0.0
    %1006 = vmatpush2.xpose.msra.mxu0 0.0
    %1007 = vmatprep.subr.mxu0 0.0
    %1008 = vmatpush2.xpose.msra.mxu0 0.0
    %1009 = vmatprep.subr.mxu0 0.0
    %1010 = vmatpush2.xpose.msra.mxu0 0.0
    %1011 = vmatprep.subr.mxu0 0.0
    %1012 = vmatpush2.xpose.msra.mxu0 0.0
    %1013 = vmatprep.subr.mxu0 0.0
    %1014 = vmatpush2.xpose.msra.mxu0 0.0
    %1015 = vmatprep.subr.mxu0 0.0
    %1016 = vmatpush2.xpose.msra.mxu0 0.0
    %1017 = vmatprep.subr.mxu0 0.0
    %1018 = vmatpush2.xpose.msra.mxu0 0.0
    %1019 = vmatprep.subr.mxu0 0.0
    %1020 = vmatpush2.xpose.msra.mxu0 0.0
    %1021 = vmatprep.subr.mxu0 0.0
    %1022 = vmatpush2.xpose.msra.mxu0 0.0
    %1023 = vmatprep.subr.mxu0 0.0
    %1024 = vmatpush2.xpose.msra.mxu0 0.0
    %1025 = vmatprep.subr.mxu0 0.0
    %1026 = vmatpush2.xpose.msra.mxu0 0.0
    %1027 = vmatprep.mubr.f32.mxu0 0.0
    %1028 = vmatmul.mubr.f32.gmra.mxu0 %v955
    %v1029 = vpop.f32.mrf.mxu0
    %v1030 = vadd.f32 0.0, %v1029
    %v1031 = vpop.f32.mrf.mxu0
    %1032 = vmatprep.mubr.f32.mxu0 0.0
    %1033 = vmatmul.mubr.f32.gmra.mxu0 %v957
    %v1034 = vpop.f32.mrf.mxu0
    %v1035 = vadd.f32 0.0, %v1034
    %v1036 = vpop.f32.mrf.mxu0
    %1037 = vdwg.mxu0
    %v1038 = vmul.f32 %v1030, 0.35355338
    %v1039 = vmul.f32 %v1035, 0.35355338
    %v1040 = vadd.f32 %v1038, %v20
    %v1041 = vadd.f32 %v1039, %v21
    %v1042 = vsel %vm429, %v1040, -inf
    %1043 = vmax.xlane.f32.xlu0 %v1042
    %v1044 = vpop.xlane.xlu0 %1043
    %v1045 = vsel %vm429, %v1041, -inf
    %1046 = vmax.xlane.f32.xlu0 %v1045
    %v1047 = vpop.xlane.xlu0 %1046
    %v1048 = vsub.f32 %v1040, %v1044
    %v1049 = vsub.f32 %v1041, %v1047
    %v1050 = vmul.f32 %v1048, 1.442695
    %v1051 = vpow.pop %v1050
    %v1052 = vmul.f32 %v1049, 1.442695
    %v1053 = vpow.pop %v1052
    %v1054 = vsel %vm429, %v1051, 0.0
    %1055 = vadd.xlane.f32.xlu0 %v1054
    %v1056 = vpop.xlane.xlu0 %1055
    %v1057 = vsel %vm429, %v1053, 0.0
    %1058 = vadd.xlane.f32.xlu0 %v1057
    %v1059 = vpop.xlane.xlu0 %1058
    %v1060 = vrcp.pop %v1056
    %v1061 = vrcp.pop %v1059
    %v1062 = vmul.f32 %v1051, %v1060
    %v1063 = vmul.f32 %v1053, %v1061
    %1064 = vrot.lane.b32.xlu0 %v327, 40
    %v1065 = vpop.permute.xlu0 %1064
    %1066 = vrot.lane.b32.xlu0 %v332, 40
    %v1067 = vpop.permute.xlu0 %1066
    %v1071 = vsel %vm429, %v1062, 0
    %v1074 = vsel %vm429, %v1063, 0
    %1076 = vmatprep.subr.mxu0 0.0
    %1077 = vmatpush1.msra.mxu0 0.0
    %1078 = vmatprep.subr.mxu0 0.0
    %1079 = vmatpush1.msra.mxu0 0.0
    %1080 = vmatprep.subr.mxu0 0.0
    %1081 = vmatpush1.msra.mxu0 0.0
    %1082 = vmatprep.subr.mxu0 0.0
    %1083 = vmatpush1.msra.mxu0 0.0
    %1084 = vmatprep.subr.mxu0 0.0
    %1085 = vmatpush1.msra.mxu0 0.0
    %1086 = vmatprep.subr.mxu0 0.0
    %1087 = vmatpush1.msra.mxu0 0.0
    %1088 = vmatprep.subr.mxu0 0.0
    %1089 = vmatpush1.msra.mxu0 0.0
    %1090 = vmatprep.subr.mxu0 0.0
    %1091 = vmatpush1.msra.mxu0 0.0
    %1092 = vmatprep.subr.mxu0 0.0
    %1093 = vmatpush1.msra.mxu0 0.0
    %1094 = vmatprep.subr.mxu0 0.0
    %1095 = vmatpush1.msra.mxu0 0.0
    %1096 = vmatprep.subr.mxu0 0.0
    %1097 = vmatpush1.msra.mxu0 0.0
    %1098 = vmatprep.subr.mxu0 0.0
    %1099 = vmatpush1.msra.mxu0 0.0
    %1100 = vmatprep.subr.mxu0 0.0
    %1101 = vmatpush1.msra.mxu0 0.0
    %1102 = vmatprep.subr.mxu0 0.0
    %1103 = vmatpush1.msra.mxu0 0.0
    %1104 = vmatprep.subr.mxu0 0.0
    %1105 = vmatpush1.msra.mxu0 %v1067
    %1106 = vmatprep.subr.mxu0 0.0
    %1107 = vmatpush1.msra.mxu0 %v1065
    %1108 = vmatprep.subr.mxu0 0.0
    %1109 = vmatpush2.msra.mxu0 0.0
    %1110 = vmatprep.subr.mxu0 0.0
    %1111 = vmatpush2.msra.mxu0 0.0
    %1112 = vmatprep.subr.mxu0 0.0
    %1113 = vmatpush2.msra.mxu0 0.0
    %1114 = vmatprep.subr.mxu0 0.0
    %1115 = vmatpush2.msra.mxu0 0.0
    %1116 = vmatprep.subr.mxu0 0.0
    %1117 = vmatpush2.msra.mxu0 0.0
    %1118 = vmatprep.subr.mxu0 0.0
    %1119 = vmatpush2.msra.mxu0 0.0
    %1120 = vmatprep.subr.mxu0 0.0
    %1121 = vmatpush2.msra.mxu0 0.0
    %1122 = vmatprep.subr.mxu0 0.0
    %1123 = vmatpush2.msra.mxu0 0.0
    %1124 = vmatprep.subr.mxu0 0.0
    %1125 = vmatpush2.msra.mxu0 0.0
    %1126 = vmatprep.subr.mxu0 0.0
    %1127 = vmatpush2.msra.mxu0 0.0
    %1128 = vmatprep.subr.mxu0 0.0
    %1129 = vmatpush2.msra.mxu0 0.0
    %1130 = vmatprep.subr.mxu0 0.0
    %1131 = vmatpush2.msra.mxu0 0.0
    %1132 = vmatprep.subr.mxu0 0.0
    %1133 = vmatpush2.msra.mxu0 0.0
    %1134 = vmatprep.subr.mxu0 0.0
    %1135 = vmatpush2.msra.mxu0 0.0
    %1136 = vmatprep.subr.mxu0 0.0
    %1137 = vmatpush2.msra.mxu0 0.0
    %1138 = vmatprep.subr.mxu0 0.0
    %1139 = vmatpush2.msra.mxu0 0.0
    %1140 = vmatprep.mubr.f32.mxu0 0.0
    %1141 = vmatmul.mubr.f32.gmra.mxu0 %v1071
    %v1142 = vpop.f32.mrf.mxu0
    %v1143 = vadd.f32 0.0, %v1142
    %v1144 = vpop.f32.mrf.mxu0
    %1145 = vmatprep.mubr.f32.mxu0 0.0
    %1146 = vmatmul.mubr.f32.gmra.mxu0 %v1074
    %v1147 = vpop.f32.mrf.mxu0
    %v1148 = vadd.f32 0.0, %v1147
    %v1149 = vpop.f32.mrf.mxu0
    %1150 = vdwg.mxu0
    %1153 = vrot.lane.b32.xlu0 %v735, 8
    %v1154 = vpop.permute.xlu0 %1153
    %1155 = vrot.lane.b32.xlu0 %v740, 8
    %v1156 = vpop.permute.xlu0 %1155
    %1161 = vrot.lane.b32.xlu0 %v939, 16
    %v1162 = vpop.permute.xlu0 %1161
    %1163 = vrot.lane.b32.xlu0 %v944, 16
    %v1164 = vpop.permute.xlu0 %1163
    %1169 = vrot.lane.b32.xlu0 %v1143, 24
    %v1170 = vpop.permute.xlu0 %1169
    %1171 = vrot.lane.b32.xlu0 %v1148, 24
    %v1172 = vpop.permute.xlu0 %1171
    %v1175 = vsel %vm341, %v531, %v1154
    %v1176 = vsel %vm341, %v536, %v1156
    %v1177 = vsel %vm429, %v1175, %v1162
    %v1178 = vsel %vm429, %v1176, %v1164
    %vm1179 = vcmask 195584
    %v1180 = vsel %vm1179, %v1177, %v1170
    %v1181 = vsel %vm1179, %v1178, %v1172
    %v1182 = vlaneseq
    %v1183 = vshrl.u32 %v1182, 7
    %v1184 = vsub.s32 0, %v1183
    %v1185 = vrot.slane %v59, %v1184
    %vm1186 = vcmask 261120
    %v1188 = vsel %vm1186, %v1180, 0
    %v1191 = vsel %vm1186, %v1181, 0
    %1193 = vmatprep.subr.mxu0 0.0
    %1194 = vmatpush1.msra.mxu0 0.0
    %1195 = vmatprep.subr.mxu0 0.0
    %1196 = vmatpush1.msra.mxu0 0.0
    %1197 = vmatprep.subr.mxu0 0.0
    %1198 = vmatpush1.msra.mxu0 0.0
    %1199 = vmatprep.subr.mxu0 0.0
    %1200 = vmatpush1.msra.mxu0 0.0
    %1201 = vmatprep.subr.mxu0 0.0
    %1202 = vmatpush1.msra.mxu0 0.0
    %1203 = vmatprep.subr.mxu0 0.0
    %1204 = vmatpush1.msra.mxu0 0.0
    %1205 = vmatprep.subr.mxu0 0.0
    %1206 = vmatpush1.msra.mxu0 0.0
    %1207 = vmatprep.subr.mxu0 0.0
    %1208 = vmatpush1.msra.mxu0 0.0
    %1209 = vmatprep.subr.mxu0 0.0
    %1210 = vmatpush1.msra.mxu0 0.0
    %1211 = vmatprep.subr.mxu0 0.0
    %1212 = vmatpush1.msra.mxu0 0.0
    %1213 = vmatprep.subr.mxu0 0.0
    %1214 = vmatpush1.msra.mxu0 0.0
    %1215 = vmatprep.subr.mxu0 0.0
    %1216 = vmatpush1.msra.mxu0 0.0
    %1217 = vmatprep.subr.mxu0 0.0
    %1218 = vmatpush1.msra.mxu0 %v55
    %1219 = vmatprep.subr.mxu0 0.0
    %1220 = vmatpush1.msra.mxu0 %v54
    %1221 = vmatprep.subr.mxu0 0.0
    %1222 = vmatpush1.msra.mxu0 %v53
    %1223 = vmatprep.subr.mxu0 0.0
    %1224 = vmatpush1.msra.mxu0 %v52
    %1225 = vmatprep.subr.mxu0 0.0
    %1226 = vmatpush2.msra.mxu0 0.0
    %1227 = vmatprep.subr.mxu0 0.0
    %1228 = vmatpush2.msra.mxu0 0.0
    %1229 = vmatprep.subr.mxu0 0.0
    %1230 = vmatpush2.msra.mxu0 0.0
    %1231 = vmatprep.subr.mxu0 0.0
    %1232 = vmatpush2.msra.mxu0 0.0
    %1233 = vmatprep.subr.mxu0 0.0
    %1234 = vmatpush2.msra.mxu0 0.0
    %1235 = vmatprep.subr.mxu0 0.0
    %1236 = vmatpush2.msra.mxu0 0.0
    %1237 = vmatprep.subr.mxu0 0.0
    %1238 = vmatpush2.msra.mxu0 0.0
    %1239 = vmatprep.subr.mxu0 0.0
    %1240 = vmatpush2.msra.mxu0 0.0
    %1241 = vmatprep.subr.mxu0 0.0
    %1242 = vmatpush2.msra.mxu0 0.0
    %1243 = vmatprep.subr.mxu0 0.0
    %1244 = vmatpush2.msra.mxu0 0.0
    %1245 = vmatprep.subr.mxu0 0.0
    %1246 = vmatpush2.msra.mxu0 0.0
    %1247 = vmatprep.subr.mxu0 0.0
    %1248 = vmatpush2.msra.mxu0 0.0
    %1249 = vmatprep.subr.mxu0 0.0
    %1250 = vmatpush2.msra.mxu0 0.0
    %1251 = vmatprep.subr.mxu0 0.0
    %1252 = vmatpush2.msra.mxu0 0.0
    %1253 = vmatprep.subr.mxu0 0.0
    %1254 = vmatpush2.msra.mxu0 0.0
    %1255 = vmatprep.subr.mxu0 0.0
    %1256 = vmatpush2.msra.mxu0 0.0
    %1257 = vmatprep.mubr.f32.mxu0 0.0
    %1258 = vmatmul.mubr.f32.gmra.mxu0 %v1188
    %v1259 = vpop.f32.mrf.mxu0
    %v1260 = vadd.f32 %v1185, %v1259
    %v1261 = vpop.f32.mrf.mxu0
    %1262 = vmatprep.mubr.f32.mxu0 0.0
    %1263 = vmatmul.mubr.f32.gmra.mxu0 %v1191
    %v1264 = vpop.f32.mrf.mxu0
    %v1265 = vadd.f32 %v1185, %v1264
    %v1266 = vpop.f32.mrf.mxu0
    %1267 = vdwg.mxu0
    %v1268 = vadd.f32 %v248, %v1260
    %v1269 = vadd.f32 %v249, %v1265
    %v1270 = vsel %vm1186, %v1268, 0.0
    %1271 = vadd.xlane.f32.xlu0 %v1270
    %v1272 = vpop.xlane.xlu0 %1271
    %v1273 = vsel %vm1186, %v1269, 0.0
    %1274 = vadd.xlane.f32.xlu0 %v1273
    %v1275 = vpop.xlane.xlu0 %1274
    %v1276 = vrcp.pop 32.0
    %v1277 = vmul.f32 %v1272, %v1276
    %v1278 = vmul.f32 %v1275, %v1276
    %v1279 = vsub.f32 %v1268, %v1277
    %v1280 = vsub.f32 %v1269, %v1278
    %v1281 = vmul.f32 %v1279, %v1279
    %v1282 = vmul.f32 %v1280, %v1280
    %v1283 = vsel %vm1186, %v1281, 0.0
    %1284 = vadd.xlane.f32.xlu0 %v1283
    %v1285 = vpop.xlane.xlu0 %1284
    %v1286 = vsel %vm1186, %v1282, 0.0
    %1287 = vadd.xlane.f32.xlu0 %v1286
    %v1288 = vpop.xlane.xlu0 %1287
    %v1289 = vmul.f32 %v1285, %v1276
    %v1290 = vmul.f32 %v1288, %v1276
    %v1291 = vadd.f32 %v1289, 1e-05
    %v1292 = vadd.f32 %v1290, 1e-05
    %v1293 = vrsqrt.pop %v1291
    %v1294 = vrsqrt.pop %v1292
    %v1295 = vmul.f32 %v1279, %v1293
    %v1296 = vmul.f32 %v1280, %v1294
    %v1297 = vlaneseq
    %v1298 = vshrl.u32 %v1297, 7
    %v1299 = vsub.s32 0, %v1298
    %v1300 = vrot.slane %v60, %v1299
    %v1301 = vmul.f32 %v1295, %v1300
    %v1302 = vmul.f32 %v1296, %v1300
    %v1303 = vlaneseq
    %v1304 = vshrl.u32 %v1303, 7
    %v1305 = vsub.s32 0, %v1304
    %v1306 = vrot.slane %v61, %v1305
    %v1307 = vadd.f32 %v1301, %v1306
    %v1308 = vadd.f32 %v1302, %v1306
    %1309 = vst.msk [vmem:[#allocation2] sm:$0xff] %vm1186, %v1307
    %1310 = vst.msk [vmem:[#allocation2 + $0x8] sm:$0xff] %vm1186, %v1308
    // Predicated region
    $region18: #{multi_head_attention.1} parent=1 // pred_check
      _
    $region19: #{multi_head_attention.1} parent=1 // pred_check_branch
      %1312 = sbr.rel (0) target = $region21
    $region20: #{multi_head_attention.1} parent=1 // pred_region
      %s1314 = ssub.s32 256, 256
      %1315 = vsyncadd [#allocation3], %s1314
      %s1316 = sshll.u32 [#allocation2], 4
      %s1317 = int_to_ptr.vmem [resolvable:$true] %s1316
      %1322 = dma.vmem_to_hbm [thread:$0]  %s1317, 256, %s4, [#allocation3], 128, 128, 8
    $region21: #{multi_head_attention.1} parent=1 // pred_fallthru
      _
    // Predicated region
    $region22: #{multi_head_attention.1} parent=1 // pred_check
      _
    $region23: #{multi_head_attention.1} parent=1 // pred_check_branch
      %1324 = sbr.rel (0) target = $region25
    $region24: #{multi_head_attention.1} parent=1 // pred_region
      %1325 = dma.done [#allocation3], 256
    $region25: #{multi_head_attention.1} parent=1 // pred_fallthru
      _
    %1326 = vsyncpa [#allocation3], 1

</llo_original>
